<compile_context>
chip_gen: v6e
topology: v6e:2x2x1
jax: 0.10.0
libtpu: 0.0.40
codegen_flags: <defaults>
</compile_context>

<pallas_src>
import functools

import jax
import jax.numpy as jnp
from jax.experimental import pallas as pl
from jax.experimental.pallas import tpu as pltpu

LN_EPS = 1e-5
INV_SQRT2 = 0.7071067811865475


def _layernorm(x, w, b):
    mu = jnp.mean(x, axis=-1, keepdims=True)
    var = jnp.mean((x - mu) ** 2, axis=-1, keepdims=True)
    return (x - mu) * jax.lax.rsqrt(var + LN_EPS) * w + b


def _gelu_exact(x):
    return 0.5 * x * (1.0 + jax.lax.erf(x * INV_SQRT2))


def encoder_block_kernel(x_ref, ln1w_ref, ln1b_ref, wqkv_ref, wo_ref,
                         ln2w_ref, ln2b_ref, w1_ref, b1_ref, w2_ref, b2_ref,
                         o_ref, xn2_ref, *, head_num, tokens, batch_block):
    """Grid step = (batch block b, MLP column tile m); m is the inner (arbitrary) axis."""
    m = pl.program_id(1)
    Bb, T, H = batch_block, tokens, head_num
    N, E = x_ref.shape
    dh = E // H

    @pl.when(m == 0)
    def _attention_and_init():
        x = x_ref[...]                                               # [N, E] f32
        xn = _layernorm(x, ln1w_ref[...], ln1b_ref[...])

        # Fused QKV projection (bf16 MXU inputs, f32 accumulation).  The sqrt(head_dim)
        # attention scale is pre-folded into the Q columns of wqkv (host side).
        qkv = jnp.dot(xn.astype(jnp.bfloat16), wqkv_ref[...],
                      preferred_element_type=jnp.float32)            # [N, 3E]
        qkv = qkv.astype(jnp.bfloat16)                               # single cast for q/k/v

        def split_heads(a):                                          # [N, E] -> [Bb*H, T, dh]
            return (a.reshape(Bb, T, H, dh)
                     .transpose(0, 2, 1, 3)
                     .reshape(Bb * H, T, dh))

        q = split_heads(qkv[:, 0:E])
        k = split_heads(qkv[:, E:2 * E])
        v = split_heads(qkv[:, 2 * E:3 * E])

        # Batched attention over all (batch, head) pairs: two big dot_generals
        # instead of Bb*H tiny ones.
        energy = jax.lax.dot_general(                                # [Bb*H, T, T]
            q, k, (((2,), (2,)), ((0,), (0,))),
            preferred_element_type=jnp.float32)
        energy = energy - jnp.max(energy, axis=-1, keepdims=True)
        p = jnp.exp(energy)
        p = p * pl.reciprocal(jnp.sum(p, axis=-1, keepdims=True), approx=True)
        heads = jax.lax.dot_general(                                 # [Bb*H, T, dh]
            p.astype(jnp.bfloat16), v, (((2,), (1,)), ((0,), (0,))),
            preferred_element_type=jnp.float32)

        # Merge heads ('b h t d -> b t (h d)') and project with one full matmul.
        att = (heads.astype(jnp.bfloat16)
                    .reshape(Bb, H, T, dh)
                    .transpose(0, 2, 1, 3)
                    .reshape(N, E))
        proj = jnp.dot(att, wo_ref[...], preferred_element_type=jnp.float32)
        x1 = x + proj                                                # residual 1

        # LN2 result (bf16) kept resident for all MLP column tiles of this block.
        xn2_ref[...] = _layernorm(x1, ln2w_ref[...], ln2b_ref[...]).astype(jnp.bfloat16)
        # Initialise the (m-resident) output block with residual + final MLP bias.
        o_ref[...] = x1 + b2_ref[...]

    # ---- one M-tile of the MLP, accumulated into the resident output block ----
    h1 = jnp.dot(xn2_ref[...], w1_ref[...],
                 preferred_element_type=jnp.float32) + b1_ref[...]   # [N, Mt] f32
    h1 = _gelu_exact(h1)
    o_ref[...] = o_ref[...] + jnp.dot(h1.astype(jnp.bfloat16), w2_ref[...],
                                      preferred_element_type=jnp.float32)


# --------------------------------------------------------------------------------------
# Wrapper: tiling heuristics + pallas_call plumbing
# --------------------------------------------------------------------------------------

def _vmem_capacity_bytes():
    try:
        return int(pltpu.get_tpu_info().vmem_capacity_bytes)
    except Exception:
        return 128 * 1024 * 1024   # v5e/v6e default


def _pick_m_tile(M):
    if M <= 512:
        return M
    for cand in (512, 384, 256, 128):
        if M % cand == 0:
            return cand
    return M


def _est_step_vmem_bytes(Bb, T, E, H, Mt):
    """Rough per-grid-step VMEM working set (bytes)."""
    N = Bb * T
    b = 2 * N * E * 4 * 2            # x in + out blocks (f32, double-buffered)
    b += N * E * 2                   # LN2 scratch (bf16)
    b += N * 3 * E * (4 + 2)         # qkv f32 + bf16 slab
    b += 3 * N * E * 2               # q/k/v head-split copies (bf16)
    b += Bb * H * T * T * (4 + 2)    # attention scores f32 + probs bf16
    b += N * E * (4 + 2 + 4)         # heads / merged att / proj temporaries
    b += N * Mt * (4 + 2)            # h1 f32 + bf16
    b += (3 * E * E + E * E) * 2     # wqkv + wo (bf16, single-buffered)
    b += 2 * (E * Mt + Mt * E) * 2   # w1/w2 tiles (bf16, double-buffered)
    return b


def _pick_batch_block(B, T, E, H, Mt, vmem_limit):
    budget = int(0.75 * vmem_limit)
    best = 1
    for d in range(1, B + 1):
        if B % d:
            continue
        if _est_step_vmem_bytes(d, T, E, H, Mt) > budget:
            break
        best = d
        if d * T >= 512:             # enough MXU rows (256-tall MXU on v6e/v7x)
            break
    # Keep >=2 grid steps along the (parallel) batch axis when affordable
    # (megacore sharding + DMA/compute overlap), without starving MXU rows.
    if B // best < 2:
        for d in range(best - 1, 0, -1):
            if B % d == 0 and B // d >= 2 and d * T >= min(512, best * T) // 2:
                best = d
                break
    return best


def _const_spec(shape):
    """Grid-invariant operand: single-buffered (no dead second VMEM buffer)."""
    try:
        return pl.BlockSpec(shape, lambda b, m: (0, 0), pipeline_mode=pl.Buffered(1))
    except Exception:
        return pl.BlockSpec(shape, lambda b, m: (0, 0))


def transformer_encoder_block(x, params, head_num, batch_block=None, m_tile=None):
    B, T, E = x.shape
    M = params["w1"].shape[1]

    # Generation-aware VMEM budget: ~50 MiB on v7x (64 MiB phys), ~100 MiB on v5e/v6e.
    vmem_limit = int(0.78 * _vmem_capacity_bytes())

    Mt = m_tile or _pick_m_tile(M)
    assert M % Mt == 0
    n_m = M // Mt

    if batch_block is None:
        batch_block = _pick_batch_block(B, T, E, head_num, Mt, vmem_limit)
    assert B % batch_block == 0
    Bb = batch_block
    N = Bb * T

    kernel = functools.partial(encoder_block_kernel, head_num=head_num,
                               tokens=T, batch_block=Bb)

    if n_m == 1:   # MLP weights are grid-invariant too -> single-buffer them
        w1_spec = _const_spec((E, Mt))
        b1_spec = _const_spec((1, Mt))
        w2_spec = _const_spec((Mt, E))
    else:
        w1_spec = pl.BlockSpec((E, Mt), lambda b, m: (0, m))
        b1_spec = pl.BlockSpec((1, Mt), lambda b, m: (0, m))
        w2_spec = pl.BlockSpec((Mt, E), lambda b, m: (m, 0))

    flops = 2 * B * T * (3 * E * E + 2 * T * E + E * E + 2 * E * M)
    transcendentals = B * head_num * T * (T + 1) + B * T * M + 2 * B * T
    bytes_accessed = (2 * B * T * E * 4                       # x in + out (f32)
                      + (4 * E * E) * 2                       # attention weights (bf16)
                      + (B // Bb) * (2 * E * M) * 2           # streamed MLP weights (bf16)
                      + (M + 7 * E) * 4)                      # biases + LN params

    out2 = pl.pallas_call(
        kernel,
        out_shape=jax.ShapeDtypeStruct((B * T, E), jnp.float32),
        grid=(B // Bb, n_m),
        in_specs=[
            pl.BlockSpec((N, E), lambda b, m: (b, 0)),        # x (flattened to 2-D)
            _const_spec((1, E)),                              # ln1 weight
            _const_spec((1, E)),                              # ln1 bias
            _const_spec((E, 3 * E)),                          # fused Wqkv (bf16, Q pre-scaled)
            _const_spec((E, E)),                              # Wo (bf16)
            _const_spec((1, E)),                              # ln2 weight
            _const_spec((1, E)),                              # ln2 bias
            w1_spec,                                          # W1 column tile (bf16)
            b1_spec,                                          # b1 tile
            w2_spec,                                          # W2 row tile (bf16)
            _const_spec((1, E)),                              # b2
        ],
        out_specs=pl.BlockSpec((N, E), lambda b, m: (b, 0)),  # resident across m
        scratch_shapes=[pltpu.VMEM((N, E), jnp.bfloat16)],    # LN2 output
        compiler_params=pltpu.CompilerParams(
            dimension_semantics=("parallel", "arbitrary"),
            vmem_limit_bytes=vmem_limit),
        cost_estimate=pl.CostEstimate(flops=flops,
                                      transcendentals=transcendentals,
                                      bytes_accessed=bytes_accessed),
    )(x.reshape(B * T, E),
      params["ln1_w"], params["ln1_b"], params["wqkv"], params["wo"],
      params["ln2_w"], params["ln2_b"], params["w1"], params["b1"],
      params["w2"], params["b2"])
    return out2.reshape(B, T, E)


# --------------------------------------------------------------------------------------
# Parameters (PyTorch-shaped weights -> kernel layout) and plain-JAX reference
# --------------------------------------------------------------------------------------

def make_params(key, E, H, M):
    """Deterministic synthetic parameters, converted once to the kernel layout/dtype."""
    dh = E // H
    scale = float(dh) ** 0.5          # NOTE: the PyTorch module MULTIPLIES by dk
    k1, k2, k3, k4, k5, k6, k7 = jax.random.split(key, 7)

    # PyTorch-shaped weights.
    w_qkv = jax.random.normal(k1, (3 * E, E), jnp.float32) * 0.05  # Linear(E,3E,bias=False).weight
    w_out = jax.random.normal(k2, (E, E), jnp.float32) * 0.05      # Linear(E,E,bias=False).weight
    w1 = jax.random.normal(k3, (M, E), jnp.float32) * 0.05         # Linear(E,M).weight
    b1 = jax.random.normal(k4, (M,), jnp.float32) * 0.05
    w2 = jax.random.normal(k5, (E, M), jnp.float32) * 0.05         # Linear(M,E).weight
    b2 = jnp.zeros((E,), jnp.float32)

    # qkv = x @ w_qkv.T ; einops '(d k h)' split of the 3E output columns.
    # Column c = d*3*H + kk*H + h  ->  reshape rows of w_qkv to [dh, 3, H, E].
    w_r = w_qkv.reshape(dh, 3, H, E)

    def per_slot(kk):
        # -> [E_in, H, dh] -> [E_in, E] with column index h*dh + d (matches 'b t (h d)')
        return jnp.transpose(w_r[:, kk], (2, 1, 0)).reshape(E, E)

    # sqrt(head_dim) attention scale folded into the Q columns (host-side, one time).
    wqkv = jnp.concatenate([per_slot(0) * scale, per_slot(1), per_slot(2)], axis=1)

    return {
        "ln1_w": (1.0 + 0.1 * jax.random.normal(k6, (1, E), jnp.float32)),
        "ln1_b": 0.1 * jax.random.normal(k7, (1, E), jnp.float32),
        # matmul weights stored once in bf16 (no per-call cast / HBM round trip)
        "wqkv": wqkv.astype(jnp.bfloat16),
        "wo": w_out.T.astype(jnp.bfloat16),
        "ln2_w": jnp.ones((1, E), jnp.float32),
        "ln2_b": jnp.zeros((1, E), jnp.float32),
        "w1": w1.T.astype(jnp.bfloat16),
        "b1": b1.reshape(1, M),
        "w2": w2.T.astype(jnp.bfloat16),
        "b2": b2.reshape(1, E),
    }


def _bdot(a, b):
    """bf16 MXU matmul with f32 accumulation (matches the kernel's numerics)."""
    return jnp.dot(a.astype(jnp.bfloat16), b.astype(jnp.bfloat16),
                   preferred_element_type=jnp.float32)


def reference_block(x, p, head_num):
    """Plain-JAX reference replicating the PyTorch forward semantics
    (with the same bf16 matmul-input rounding as the kernel)."""
    B, T, E = x.shape
    M = p["w1"].shape[1]
    dh = E // head_num

    xn = _layernorm(x, p["ln1_w"], p["ln1_b"])
    qkv = _bdot(xn.reshape(B * T, E), p["wqkv"]).reshape(B, T, 3 * E)
    q = qkv[..., 0:E]                 # sqrt(head_dim) scale already in the weights
    k = qkv[..., E:2 * E]
    v = qkv[..., 2 * E:3 * E]
    q = q.reshape(B, T, head_num, dh).transpose(0, 2, 1, 3)
    k = k.reshape(B, T, head_num, dh).transpose(0, 2, 1, 3)
    v = v.reshape(B, T, head_num, dh).transpose(0, 2, 1, 3)
    energy = jnp.einsum("bhid,bhjd->bhij",
                        q.astype(jnp.bfloat16), k.astype(jnp.bfloat16),
                        preferred_element_type=jnp.float32)
    attn = jax.nn.softmax(energy, axis=-1)
    o = jnp.einsum("bhij,bhjd->bhid",
                   attn.astype(jnp.bfloat16), v.astype(jnp.bfloat16),
                   preferred_element_type=jnp.float32)
    o = o.transpose(0, 2, 1, 3).reshape(B, T, E)
    proj = _bdot(o.reshape(B * T, E), p["wo"]).reshape(B, T, E)
    x1 = x + proj
    xn2 = _layernorm(x1, p["ln2_w"], p["ln2_b"])
    h1 = _bdot(xn2.reshape(B * T, E), p["w1"]).reshape(B, T, M) + p["b1"]
    h1 = _gelu_exact(h1)
    h2 = _bdot(h1.reshape(B * T, M), p["w2"]).reshape(B, T, E) + p["b2"]
    return x1 + h2


if __name__ == "__main__":
    B, T, E, H, M = 2, 8, 32, 4, 64
    key = jax.random.PRNGKey(0)
    kx, kp = jax.random.split(key)
    x = jax.random.normal(kx, (B, T, E), jnp.float32)
    params = make_params(kp, E, H, M)

    out = transformer_encoder_block(x, params, head_num=H)
    out = jax.block_until_ready(out)
    assert out.shape == (B, T, E)

    ref = reference_block(x, params, head_num=H)
    max_err = float(jnp.max(jnp.abs(out - ref)))
    assert jnp.allclose(out, ref, atol=5e-3, rtol=5e-3), max_err
    print("KERNEL_OK")
</pallas_src>

<mosaic_0001>
module attributes {stable_mosaic.version = 11 : i64} {
  func.func @encoder_block_kernel(%arg0: i32, %arg1: i32, %arg2: memref<8x32xf32, #tpu.memory_space<vmem>>, %arg3: memref<1x32xf32, #tpu.memory_space<vmem>>, %arg4: memref<1x32xf32, #tpu.memory_space<vmem>>, %arg5: memref<32x96xbf16, #tpu.memory_space<vmem>>, %arg6: memref<32x32xbf16, #tpu.memory_space<vmem>>, %arg7: memref<1x32xf32, #tpu.memory_space<vmem>>, %arg8: memref<1x32xf32, #tpu.memory_space<vmem>>, %arg9: memref<32x64xbf16, #tpu.memory_space<vmem>>, %arg10: memref<1x64xf32, #tpu.memory_space<vmem>>, %arg11: memref<64x32xbf16, #tpu.memory_space<vmem>>, %arg12: memref<1x32xf32, #tpu.memory_space<vmem>>, %arg13: memref<8x32xf32, #tpu.memory_space<vmem>>, %arg14: memref<8x32xbf16, #tpu.memory_space<vmem>>) attributes {dimension_semantics = [#tpu.dimension_semantics<parallel>, #tpu.dimension_semantics<arbitrary>], iteration_bounds = array<i64: 2, 1>, scalar_prefetch = 0 : i64, scratch_operands = 1 : i64, tpu.core_type = #tpu.core_type<tc>, window_params = [{transform_indices = @transform_0, window_bounds = array<i64: 8, 32>}, {pipeline_mode = #tpu.pipeline_mode<synchronous>, transform_indices = @transform_1, window_bounds = array<i64: 1, 32>}, {pipeline_mode = #tpu.pipeline_mode<synchronous>, transform_indices = @transform_2, window_bounds = array<i64: 1, 32>}, {pipeline_mode = #tpu.pipeline_mode<synchronous>, transform_indices = @transform_3, window_bounds = array<i64: 32, 96>}, {pipeline_mode = #tpu.pipeline_mode<synchronous>, transform_indices = @transform_4, window_bounds = array<i64: 32, 32>}, {pipeline_mode = #tpu.pipeline_mode<synchronous>, transform_indices = @transform_5, window_bounds = array<i64: 1, 32>}, {pipeline_mode = #tpu.pipeline_mode<synchronous>, transform_indices = @transform_6, window_bounds = array<i64: 1, 32>}, {pipeline_mode = #tpu.pipeline_mode<synchronous>, transform_indices = @transform_7, window_bounds = array<i64: 32, 64>}, {pipeline_mode = #tpu.pipeline_mode<synchronous>, transform_indices = @transform_8, window_bounds = array<i64: 1, 64>}, {pipeline_mode = #tpu.pipeline_mode<synchronous>, transform_indices = @transform_9, window_bounds = array<i64: 64, 32>}, {pipeline_mode = #tpu.pipeline_mode<synchronous>, transform_indices = @transform_10, window_bounds = array<i64: 1, 32>}, {transform_indices = @transform_11, window_bounds = array<i64: 8, 32>}]} {
    %c0_i32 = arith.constant 0 : i32
    %0 = arith.cmpi eq, %arg1, %c0_i32 : i32
    %1 = arith.extui %0 : i1 to i32
    %c0_i32_0 = arith.constant 0 : i32
    %2 = arith.cmpi ne, %1, %c0_i32_0 : i32
    scf.if %2 {
      %c0_16 = arith.constant 0 : index
      %c0_17 = arith.constant 0 : index
      %23 = vector.load %arg2[%c0_16, %c0_17] : memref<8x32xf32, #tpu.memory_space<vmem>>, vector<8x32xf32>
      %c0_18 = arith.constant 0 : index
      %c0_19 = arith.constant 0 : index
      %24 = vector.load %arg3[%c0_18, %c0_19] : memref<1x32xf32, #tpu.memory_space<vmem>>, vector<1x32xf32>
      %c0_20 = arith.constant 0 : index
      %c0_21 = arith.constant 0 : index
      %25 = vector.load %arg4[%c0_20, %c0_21] : memref<1x32xf32, #tpu.memory_space<vmem>>, vector<1x32xf32>
      %cst_22 = arith.constant dense<0.000000e+00> : vector<8xf32>
      %26 = vector.multi_reduction <add>, %23, %cst_22 [1] : vector<8x32xf32> to vector<8xf32>
      %27 = vector.shape_cast %26 : vector<8xf32> to vector<8x1xf32>
      %cst_23 = arith.constant 3.200000e+01 : f32
      %28 = vector.broadcast %cst_23 : f32 to vector<8x1xf32>
      %29 = arith.divf %27, %28 : vector<8x1xf32>
      %30 = vector.broadcast %29 : vector<8x1xf32> to vector<8x32xf32>
      %31 = arith.subf %23, %30 : vector<8x32xf32>
      %32 = arith.mulf %31, %31 : vector<8x32xf32>
      %cst_24 = arith.constant dense<0.000000e+00> : vector<8xf32>
      %33 = vector.multi_reduction <add>, %32, %cst_24 [1] : vector<8x32xf32> to vector<8xf32>
      %34 = vector.shape_cast %33 : vector<8xf32> to vector<8x1xf32>
      %cst_25 = arith.constant 3.200000e+01 : f32
      %35 = vector.broadcast %cst_25 : f32 to vector<8x1xf32>
      %36 = arith.divf %34, %35 : vector<8x1xf32>
      %37 = vector.broadcast %29 : vector<8x1xf32> to vector<8x32xf32>
      %38 = arith.subf %23, %37 : vector<8x32xf32>
      %cst_26 = arith.constant 9.99999974E-6 : f32
      %39 = vector.broadcast %cst_26 : f32 to vector<8x1xf32>
      %40 = arith.addf %36, %39 : vector<8x1xf32>
      %41 = math.rsqrt %40 : vector<8x1xf32>
      %42 = vector.broadcast %41 : vector<8x1xf32> to vector<8x32xf32>
      %43 = arith.mulf %38, %42 : vector<8x32xf32>
      %44 = vector.broadcast %24 : vector<1x32xf32> to vector<8x32xf32>
      %45 = arith.mulf %43, %44 : vector<8x32xf32>
      %46 = vector.broadcast %25 : vector<1x32xf32> to vector<8x32xf32>
      %47 = arith.addf %45, %46 : vector<8x32xf32>
      %48 = arith.truncf %47 : vector<8x32xf32> to vector<8x32xbf16>
      %c0_27 = arith.constant 0 : index
      %c0_28 = arith.constant 0 : index
      %49 = vector.load %arg5[%c0_27, %c0_28] : memref<32x96xbf16, #tpu.memory_space<vmem>>, vector<32x96xbf16>
      %cst_29 = arith.constant dense<0.000000e+00> : vector<8x96xf32>
      %50 = tpu.matmul %48, %49, %cst_29 {dimension_numbers = #tpu.dot_dimension_numbers<[1], [0], [0], [1], [0, 0, 1, 1], [], []>} : vector<8x32xbf16>, vector<32x96xbf16>, vector<8x96xf32> -> vector<8x96xf32>
      %51 = arith.truncf %50 : vector<8x96xf32> to vector<8x96xbf16>
      %52 = vector.extract_strided_slice %51 {offsets = [0, 0], sizes = [8, 32], strides = [1, 1]} : vector<8x96xbf16> to vector<8x32xbf16>
      %53 = vector.shape_cast %52 : vector<8x32xbf16> to vector<1x8x4x8xbf16>
      %54 = tpu.transpose %53, [0, 2, 1, 3] : vector<1x8x4x8xbf16> -> vector<1x4x8x8xbf16>
      %55 = vector.shape_cast %54 : vector<1x4x8x8xbf16> to vector<4x8x8xbf16>
      %56 = vector.extract_strided_slice %51 {offsets = [0, 32], sizes = [8, 32], strides = [1, 1]} : vector<8x96xbf16> to vector<8x32xbf16>
      %57 = vector.shape_cast %56 : vector<8x32xbf16> to vector<1x8x4x8xbf16>
      %58 = tpu.transpose %57, [0, 2, 1, 3] : vector<1x8x4x8xbf16> -> vector<1x4x8x8xbf16>
      %59 = vector.shape_cast %58 : vector<1x4x8x8xbf16> to vector<4x8x8xbf16>
      %60 = vector.extract_strided_slice %51 {offsets = [0, 64], sizes = [8, 32], strides = [1, 1]} : vector<8x96xbf16> to vector<8x32xbf16>
      %61 = vector.shape_cast %60 : vector<8x32xbf16> to vector<1x8x4x8xbf16>
      %62 = tpu.transpose %61, [0, 2, 1, 3] : vector<1x8x4x8xbf16> -> vector<1x4x8x8xbf16>
      %63 = vector.shape_cast %62 : vector<1x4x8x8xbf16> to vector<4x8x8xbf16>
      %cst_30 = arith.constant dense<0.000000e+00> : vector<4x8x8xf32>
      %64 = tpu.matmul %55, %59, %cst_30 {dimension_numbers = #tpu.dot_dimension_numbers<[2], [2], [1], [1], [0, 0, 0, 1, 1, 1], [0], [0]>} : vector<4x8x8xbf16>, vector<4x8x8xbf16>, vector<4x8x8xf32> -> vector<4x8x8xf32>
      %cst_31 = arith.constant dense<0xFF800000> : vector<4x8xf32>
      %65 = vector.multi_reduction <maximumf>, %64, %cst_31 [2] : vector<4x8x8xf32> to vector<4x8xf32>
      %66 = vector.shape_cast %65 : vector<4x8xf32> to vector<4x8x1xf32>
      %67 = vector.broadcast %66 : vector<4x8x1xf32> to vector<4x8x8xf32>
      %68 = arith.subf %64, %67 : vector<4x8x8xf32>
      %69 = math.exp %68 : vector<4x8x8xf32>
      %cst_32 = arith.constant dense<0.000000e+00> : vector<4x8xf32>
      %70 = vector.multi_reduction <add>, %69, %cst_32 [2] : vector<4x8x8xf32> to vector<4x8xf32>
      %71 = vector.shape_cast %70 : vector<4x8xf32> to vector<4x8x1xf32>
      %72 = tpu.reciprocal %71 {approx = true} : vector<4x8x1xf32> -> vector<4x8x1xf32>
      %73 = vector.broadcast %72 : vector<4x8x1xf32> to vector<4x8x8xf32>
      %74 = arith.mulf %69, %73 : vector<4x8x8xf32>
      %75 = arith.truncf %74 : vector<4x8x8xf32> to vector<4x8x8xbf16>
      %cst_33 = arith.constant dense<0.000000e+00> : vector<4x8x8xf32>
      %76 = tpu.matmul %75, %63, %cst_33 {dimension_numbers = #tpu.dot_dimension_numbers<[2], [1], [1], [2], [0, 0, 0, 1, 1, 2], [0], [0]>} : vector<4x8x8xbf16>, vector<4x8x8xbf16>, vector<4x8x8xf32> -> vector<4x8x8xf32>
      %77 = arith.truncf %76 : vector<4x8x8xf32> to vector<4x8x8xbf16>
      %78 = vector.shape_cast %77 : vector<4x8x8xbf16> to vector<1x4x8x8xbf16>
      %79 = tpu.transpose %78, [0, 2, 1, 3] : vector<1x4x8x8xbf16> -> vector<1x8x4x8xbf16>
      %80 = vector.shape_cast %79 : vector<1x8x4x8xbf16> to vector<8x32xbf16>
      %c0_34 = arith.constant 0 : index
      %c0_35 = arith.constant 0 : index
      %81 = vector.load %arg6[%c0_34, %c0_35] : memref<32x32xbf16, #tpu.memory_space<vmem>>, vector<32x32xbf16>
      %cst_36 = arith.constant dense<0.000000e+00> : vector<8x32xf32>
      %82 = tpu.matmul %80, %81, %cst_36 {dimension_numbers = #tpu.dot_dimension_numbers<[1], [0], [0], [1], [0, 0, 1, 1], [], []>} : vector<8x32xbf16>, vector<32x32xbf16>, vector<8x32xf32> -> vector<8x32xf32>
      %83 = arith.addf %23, %82 : vector<8x32xf32>
      %c0_37 = arith.constant 0 : index
      %c0_38 = arith.constant 0 : index
      %84 = vector.load %arg7[%c0_37, %c0_38] : memref<1x32xf32, #tpu.memory_space<vmem>>, vector<1x32xf32>
      %c0_39 = arith.constant 0 : index
      %c0_40 = arith.constant 0 : index
      %85 = vector.load %arg8[%c0_39, %c0_40] : memref<1x32xf32, #tpu.memory_space<vmem>>, vector<1x32xf32>
      %cst_41 = arith.constant dense<0.000000e+00> : vector<8xf32>
      %86 = vector.multi_reduction <add>, %83, %cst_41 [1] : vector<8x32xf32> to vector<8xf32>
      %87 = vector.shape_cast %86 : vector<8xf32> to vector<8x1xf32>
      %cst_42 = arith.constant 3.200000e+01 : f32
      %88 = vector.broadcast %cst_42 : f32 to vector<8x1xf32>
      %89 = arith.divf %87, %88 : vector<8x1xf32>
      %90 = vector.broadcast %89 : vector<8x1xf32> to vector<8x32xf32>
      %91 = arith.subf %83, %90 : vector<8x32xf32>
      %92 = arith.mulf %91, %91 : vector<8x32xf32>
      %cst_43 = arith.constant dense<0.000000e+00> : vector<8xf32>
      %93 = vector.multi_reduction <add>, %92, %cst_43 [1] : vector<8x32xf32> to vector<8xf32>
      %94 = vector.shape_cast %93 : vector<8xf32> to vector<8x1xf32>
      %cst_44 = arith.constant 3.200000e+01 : f32
      %95 = vector.broadcast %cst_44 : f32 to vector<8x1xf32>
      %96 = arith.divf %94, %95 : vector<8x1xf32>
      %97 = vector.broadcast %89 : vector<8x1xf32> to vector<8x32xf32>
      %98 = arith.subf %83, %97 : vector<8x32xf32>
      %cst_45 = arith.constant 9.99999974E-6 : f32
      %99 = vector.broadcast %cst_45 : f32 to vector<8x1xf32>
      %100 = arith.addf %96, %99 : vector<8x1xf32>
      %101 = math.rsqrt %100 : vector<8x1xf32>
      %102 = vector.broadcast %101 : vector<8x1xf32> to vector<8x32xf32>
      %103 = arith.mulf %98, %102 : vector<8x32xf32>
      %104 = vector.broadcast %84 : vector<1x32xf32> to vector<8x32xf32>
      %105 = arith.mulf %103, %104 : vector<8x32xf32>
      %106 = vector.broadcast %85 : vector<1x32xf32> to vector<8x32xf32>
      %107 = arith.addf %105, %106 : vector<8x32xf32>
      %108 = arith.truncf %107 : vector<8x32xf32> to vector<8x32xbf16>
      %c0_46 = arith.constant 0 : index
      %c0_47 = arith.constant 0 : index
      %109 = vector.load %arg14[%c0_46, %c0_47] : memref<8x32xbf16, #tpu.memory_space<vmem>>, vector<8x32xbf16>
      tpu.vector_store %arg14[%c0_46, %c0_47], %108 {strides = array<i32>} : memref<8x32xbf16, #tpu.memory_space<vmem>>, vector<8x32xbf16>,
      %c0_48 = arith.constant 0 : index
      %c0_49 = arith.constant 0 : index
      %110 = vector.load %arg12[%c0_48, %c0_49] : memref<1x32xf32, #tpu.memory_space<vmem>>, vector<1x32xf32>
      %111 = vector.broadcast %110 : vector<1x32xf32> to vector<8x32xf32>
      %112 = arith.addf %83, %111 : vector<8x32xf32>
      %c0_50 = arith.constant 0 : index
      %c0_51 = arith.constant 0 : index
      %113 = vector.load %arg13[%c0_50, %c0_51] : memref<8x32xf32, #tpu.memory_space<vmem>>, vector<8x32xf32>
      tpu.vector_store %arg13[%c0_50, %c0_51], %112 {strides = array<i32>} : memref<8x32xf32, #tpu.memory_space<vmem>>, vector<8x32xf32>,
    } else {
    }
    %c0 = arith.constant 0 : index
    %c0_1 = arith.constant 0 : index
    %3 = vector.load %arg14[%c0, %c0_1] : memref<8x32xbf16, #tpu.memory_space<vmem>>, vector<8x32xbf16>
    %c0_2 = arith.constant 0 : index
    %c0_3 = arith.constant 0 : index
    %4 = vector.load %arg9[%c0_2, %c0_3] : memref<32x64xbf16, #tpu.memory_space<vmem>>, vector<32x64xbf16>
    %cst = arith.constant dense<0.000000e+00> : vector<8x64xf32>
    %5 = tpu.matmul %3, %4, %cst {dimension_numbers = #tpu.dot_dimension_numbers<[1], [0], [0], [1], [0, 0, 1, 1], [], []>} : vector<8x32xbf16>, vector<32x64xbf16>, vector<8x64xf32> -> vector<8x64xf32>
    %c0_4 = arith.constant 0 : index
    %c0_5 = arith.constant 0 : index
    %6 = vector.load %arg10[%c0_4, %c0_5] : memref<1x64xf32, #tpu.memory_space<vmem>>, vector<1x64xf32>
    %7 = vector.broadcast %6 : vector<1x64xf32> to vector<8x64xf32>
    %8 = arith.addf %5, %7 : vector<8x64xf32>
    %cst_6 = arith.constant 5.000000e-01 : f32
    %9 = vector.broadcast %cst_6 : f32 to vector<8x64xf32>
    %10 = arith.mulf %9, %8 : vector<8x64xf32>
    %cst_7 = arith.constant 0.707106769 : f32
    %11 = vector.broadcast %cst_7 : f32 to vector<8x64xf32>
    %12 = arith.mulf %8, %11 : vector<8x64xf32>
    %13 = math.erf %12 : vector<8x64xf32>
    %cst_8 = arith.constant 1.000000e+00 : f32
    %14 = vector.broadcast %cst_8 : f32 to vector<8x64xf32>
    %15 = arith.addf %14, %13 : vector<8x64xf32>
    %16 = arith.mulf %10, %15 : vector<8x64xf32>
    %c0_9 = arith.constant 0 : index
    %c0_10 = arith.constant 0 : index
    %17 = vector.load %arg13[%c0_9, %c0_10] : memref<8x32xf32, #tpu.memory_space<vmem>>, vector<8x32xf32>
    %18 = arith.truncf %16 : vector<8x64xf32> to vector<8x64xbf16>
    %c0_11 = arith.constant 0 : index
    %c0_12 = arith.constant 0 : index
    %19 = vector.load %arg11[%c0_11, %c0_12] : memref<64x32xbf16, #tpu.memory_space<vmem>>, vector<64x32xbf16>
    %cst_13 = arith.constant dense<0.000000e+00> : vector<8x32xf32>
    %20 = tpu.matmul %18, %19, %cst_13 {dimension_numbers = #tpu.dot_dimension_numbers<[1], [0], [0], [1], [0, 0, 1, 1], [], []>} : vector<8x64xbf16>, vector<64x32xbf16>, vector<8x32xf32> -> vector<8x32xf32>
    %21 = arith.addf %17, %20 : vector<8x32xf32>
    %c0_14 = arith.constant 0 : index
    %c0_15 = arith.constant 0 : index
    %22 = vector.load %arg13[%c0_14, %c0_15] : memref<8x32xf32, #tpu.memory_space<vmem>>, vector<8x32xf32>
    tpu.vector_store %arg13[%c0_14, %c0_15], %21 {strides = array<i32>} : memref<8x32xf32, #tpu.memory_space<vmem>>, vector<8x32xf32>,
    return
  }
  func.func @transform_0(%arg0: i32, %arg1: i32) -> (i32, i32) {
    %c0_i32 = arith.constant 0 : i32
    %c0_i32_0 = arith.constant 0 : i32
    return %arg0, %c0_i32 : i32, i32
  }
  func.func @transform_1(%arg0: i32, %arg1: i32) -> (i32, i32) {
    %c0_i32 = arith.constant 0 : i32
    %c0_i32_0 = arith.constant 0 : i32
    %c0_i32_1 = arith.constant 0 : i32
    return %c0_i32, %c0_i32_0 : i32, i32
  }
  func.func @transform_2(%arg0: i32, %arg1: i32) -> (i32, i32) {
    %c0_i32 = arith.constant 0 : i32
    %c0_i32_0 = arith.constant 0 : i32
    %c0_i32_1 = arith.constant 0 : i32
    return %c0_i32, %c0_i32_0 : i32, i32
  }
  func.func @transform_3(%arg0: i32, %arg1: i32) -> (i32, i32) {
    %c0_i32 = arith.constant 0 : i32
    %c0_i32_0 = arith.constant 0 : i32
    %c0_i32_1 = arith.constant 0 : i32
    return %c0_i32, %c0_i32_0 : i32, i32
  }
  func.func @transform_4(%arg0: i32, %arg1: i32) -> (i32, i32) {
    %c0_i32 = arith.constant 0 : i32
    %c0_i32_0 = arith.constant 0 : i32
    %c0_i32_1 = arith.constant 0 : i32
    return %c0_i32, %c0_i32_0 : i32, i32
  }
  func.func @transform_5(%arg0: i32, %arg1: i32) -> (i32, i32) {
    %c0_i32 = arith.constant 0 : i32
    %c0_i32_0 = arith.constant 0 : i32
    %c0_i32_1 = arith.constant 0 : i32
    return %c0_i32, %c0_i32_0 : i32, i32
  }
  func.func @transform_6(%arg0: i32, %arg1: i32) -> (i32, i32) {
    %c0_i32 = arith.constant 0 : i32
    %c0_i32_0 = arith.constant 0 : i32
    %c0_i32_1 = arith.constant 0 : i32
    return %c0_i32, %c0_i32_0 : i32, i32
  }
  func.func @transform_7(%arg0: i32, %arg1: i32) -> (i32, i32) {
    %c0_i32 = arith.constant 0 : i32
    %c0_i32_0 = arith.constant 0 : i32
    %c0_i32_1 = arith.constant 0 : i32
    return %c0_i32, %c0_i32_0 : i32, i32
  }
  func.func @transform_8(%arg0: i32, %arg1: i32) -> (i32, i32) {
    %c0_i32 = arith.constant 0 : i32
    %c0_i32_0 = arith.constant 0 : i32
    %c0_i32_1 = arith.constant 0 : i32
    return %c0_i32, %c0_i32_0 : i32, i32
  }
  func.func @transform_9(%arg0: i32, %arg1: i32) -> (i32, i32) {
    %c0_i32 = arith.constant 0 : i32
    %c0_i32_0 = arith.constant 0 : i32
    %c0_i32_1 = arith.constant 0 : i32
    return %c0_i32, %c0_i32_0 : i32, i32
  }
  func.func @transform_10(%arg0: i32, %arg1: i32) -> (i32, i32) {
    %c0_i32 = arith.constant 0 : i32
    %c0_i32_0 = arith.constant 0 : i32
    %c0_i32_1 = arith.constant 0 : i32
    return %c0_i32, %c0_i32_0 : i32, i32
  }
  func.func @transform_11(%arg0: i32, %arg1: i32) -> (i32, i32) {
    %c0_i32 = arith.constant 0 : i32
    %c0_i32_0 = arith.constant 0 : i32
    return %arg0, %c0_i32 : i32, i32
  }
}

</mosaic_0001>

<llo_original>
// kernel: tpu_custom_call.1
$region0: #{tpu_custom_call.1}
  #allocation0 [shape = 'u32[]', space=smem, size = 0x4, offset = 0x4, fixed_abs, tag = 'smem constant byte address 0x4 - core index']
  #allocation1 [shape = 'u32[144,128]{1,0:T(1,128)}', space=vmem, size = 0x12000, scoped, tag = 'internal scratch']
  #allocation2 [shape = 'bf16[8,32]{1,0:T(8,128)(2,1)}', space=vmem, size = 0x800, scoped, tag = 'scratch operand']
  %s0 = inlined_call_operand.vmem [shape: f32[16,32], index: 0, kind: input, shape index: {}]
  %s1 = inlined_call_operand.hbm [shape: f32[1,32], index: 1, kind: input, shape index: {}]
  %s2 = inlined_call_operand.hbm [shape: f32[1,32], index: 2, kind: input, shape index: {}]
  %s3 = inlined_call_operand.vmem [shape: bf16[32,96], index: 3, kind: input, shape index: {}]
  %s4 = inlined_call_operand.vmem [shape: bf16[32,32], index: 4, kind: input, shape index: {}]
  %s5 = inlined_call_operand.hbm [shape: f32[1,32], index: 5, kind: input, shape index: {}]
  %s6 = inlined_call_operand.hbm [shape: f32[1,32], index: 6, kind: input, shape index: {}]
  %s7 = inlined_call_operand.hbm [shape: bf16[32,64], index: 7, kind: input, shape index: {}]
  %s8 = inlined_call_operand.hbm [shape: f32[1,64], index: 8, kind: input, shape index: {}]
  %s9 = inlined_call_operand.vmem [shape: bf16[64,32], index: 9, kind: input, shape index: {}]
  %s10 = inlined_call_operand.vmem [shape: f32[1,32], index: 10, kind: input, shape index: {}]
  %s11 = inlined_call_operand.hbm [shape: f32[16,32], index: 11, kind: output, shape index: {}]
  %s12 = sld [smem:[#allocation0]]
  $region105: #{tpu_custom_call.1} parent=0
    _
  %s14 = ssub.s32 1, %s12
  %s15 = scalar_select 0, %s14, %s12
  $region1: #{tpu_custom_call.1} parent=0
    #allocation3 [shape = 'u8[512]{0}', space=vmem, size = 0x400, scoped, tag = 'input window, operand 1, single buffered']
    #allocation4 [shape = 's32[2]{0}', space=sflag, size = 0x8, scoped, tag = 'scoped memory for tpu_custom_call.1']
    #allocation5 [shape = 's32[2]{0}', space=sflag, size = 0x8, scoped, tag = 'scoped memory for tpu_custom_call.1']
    #allocation6 [shape = 'u8[512]{0}', space=vmem, size = 0x400, scoped, tag = 'input window, operand 2, single buffered']
    #allocation7 [shape = 's32[1]{0}', space=sflag, size = 0x4, scoped, tag = 'scoped memory for tpu_custom_call.1']
    #allocation8 [shape = 'u8[512]{0}', space=vmem, size = 0x400, scoped, tag = 'input window, operand 5, single buffered']
    #allocation9 [shape = 'u8[512]{0}', space=vmem, size = 0x400, scoped, tag = 'input window, operand 6, single buffered']
    #allocation10 [shape = 's32[1]{0}', space=sflag, size = 0x4, scoped, tag = 'scoped memory for tpu_custom_call.1']
    #allocation11 [shape = 'u8[8192]{0}', space=vmem, size = 0x2000, scoped, tag = 'input window, operand 7, single buffered']
    #allocation12 [shape = 'u8[512]{0}', space=vmem, size = 0x400, scoped, tag = 'input window, operand 8, single buffered']
    #allocation13 [shape = 's32[1]{0}', space=sflag, size = 0x4, scoped, tag = 'scoped memory for tpu_custom_call.1']
    #allocation14 [shape = 'u8[8192]{0}', space=vmem, size = 0x2000, scoped, tag = 'output window, operand 0']
    %16 = vsyncpa [#allocation4], 0
    %17 = vsyncpa [#allocation7], 0
    %18 = vsyncpa [#allocation10], 0
    %19 = vsyncpa [#allocation13], 0
    %20 = vsyncpa [#allocation5], 0
    %s21 = scalar_lea.sflag [#allocation5], 1
    %22 = vsyncpa %s21, 0
    loop: start=0, step=1, limit=4
    $region2: #{tpu_custom_call.1} parent=1 // loop_pre_header
      _
    $region3: #{tpu_custom_call.1} parent=1 // loop_header
      %s24 = sphi 0, %s28
      %p25 = scmp.ge.s32.totalorder %s24, 4
      %s31 = sphi 0, %s43
      %s32 = sphi 0, %s39
      %s33 = sphi 0, %s31
      %s34 = sphi 0, %s32
      %s35 = sphi 0, %s33
      %s36 = sphi 0, %s34
      %s46 = sphi 0, %s48
      %s49 = sphi 0, %s46
      %s50 = sphi 0, %s49
      %s66 = sphi 0, %s50
      %s70 = sphi 0, %s70
      %s72 = sphi 0, %s70
      %s73 = sphi 0, %s72
      %s87 = sphi 0, %s73
      %s91 = sphi 0, %s91
      %s93 = sphi 0, %s91
      %s94 = sphi 0, %s93
      %s108 = sphi 0, %s94
      %s112 = sphi 0, %s112
      %s114 = sphi 0, %s112
      %s115 = sphi 0, %s114
      %s129 = sphi 0, %s115
      %s133 = sphi 0, %s133
      %s135 = sphi 0, %s133
      %s136 = sphi 0, %s135
      %s150 = sphi 0, %s136
      %s154 = sphi 0, %s154
      %s156 = sphi 0, %s154
      %s157 = sphi 0, %s156
      %s171 = sphi 0, %s157
      %s175 = sphi 0, %s175
      %s177 = sphi 0, %s175
      %s178 = sphi 0, %s177
      %s192 = sphi 0, %s178
      %s196 = sphi 0, %s196
      %s198 = sphi 0, %s196
      %s199 = sphi 0, %s198
      %s213 = sphi 0, %s199
      %s217 = sphi 0, %s217
      %s219 = sphi 0, %s217
      %s220 = sphi 0, %s219
      %s234 = sphi 0, %s220
      %s238 = sphi 0, %s238
      %s240 = sphi 0, %s238
      %s241 = sphi 0, %s240
      %s255 = sphi 0, %s241
      %s259 = sphi 0, %s259
      %s261 = sphi 0, %s259
      %s262 = sphi 0, %s261
      %s276 = sphi 0, %s262
      %s282 = sphi 0, %s284
      %s285 = sphi 0, %s282
      %s286 = sphi 0, %s285
      %s302 = sphi 0, %s286
    $region4: #{tpu_custom_call.1} parent=1 // loop_header_branch
      %27 = sbr.rel (%p25) target = $region8
    $region5: #{tpu_custom_call.1} parent=1 // loop_body
      %s29 = ssub.s32 %s24, 1
      %s30 = ssub.s32 %s24, 2
      %s37 = sadd.s32 1, %s32
      %p38 = scmp.ge.s32.totalorder %s37, 1
      %s39 = scalar_select %p38, 0, %s37
      %s40 = sadd.s32 1, %s31
      %s41 = scalar_select %p38, %s40, %s31
      %p42 = scmp.ge.s32.totalorder %s41, 2
      %s43 = scalar_select %p42, 0, %s41
      %s44 = ssub.s32 %s31, %s43
      %p45 = scmp.eq.s32.totalorder %s44, 0
      %s47 = sadd.s32 %s46, 1
      %s48 = scalar_select %p45, %s46, %s47
      %p51 = pneg %p45
      %p52 = scmp.eq.s32.totalorder %s24, 1
      %p53 = por %p51, %p52
      %p54 = scmp.ne.s32.totalorder %s46, %s49
      %p55 = scmp.eq.s32.totalorder %s24, 0
      %p56 = por %p54, %p55
      %p57 = scmp.ne.s32.totalorder %s46, %s49
      %p58 = scmp.eq.s32.totalorder %s29, 1
      %p59 = por %p57, %p58
      %p60 = scmp.ne.s32.totalorder %s49, %s50
      %p61 = scmp.eq.s32.totalorder %s29, 0
      %p62 = por %p60, %p61
      %p63 = scmp.ne.s32.totalorder %s49, %s50
      %p64 = scmp.eq.s32.totalorder %s30, 1
      %p65 = por %p63, %p64
      %p67 = scmp.ne.s32.totalorder %s50, %s66
      %p68 = scmp.eq.s32.totalorder %s30, 0
      %p69 = por %p67, %p68
      %s71 = sadd.s32 %s70, 1
      %p74 = scmp.eq.s32.totalorder %s24, 1
      %p75 = scmp.ne.s32.totalorder %s70, %s72
      %p76 = scmp.eq.s32.totalorder %s24, 0
      %p77 = por %p75, %p76
      %p78 = scmp.ne.s32.totalorder %s70, %s72
      %p79 = scmp.eq.s32.totalorder %s29, 1
      %p80 = por %p78, %p79
      %p81 = scmp.ne.s32.totalorder %s72, %s73
      %p82 = scmp.eq.s32.totalorder %s29, 0
      %p83 = por %p81, %p82
      %p84 = scmp.ne.s32.totalorder %s72, %s73
      %p85 = scmp.eq.s32.totalorder %s30, 1
      %p86 = por %p84, %p85
      %p88 = scmp.ne.s32.totalorder %s73, %s87
      %p89 = scmp.eq.s32.totalorder %s30, 0
      %p90 = por %p88, %p89
      %s92 = sadd.s32 %s91, 1
      %p95 = scmp.eq.s32.totalorder %s24, 1
      %p96 = scmp.ne.s32.totalorder %s91, %s93
      %p97 = scmp.eq.s32.totalorder %s24, 0
      %p98 = por %p96, %p97
      %p99 = scmp.ne.s32.totalorder %s91, %s93
      %p100 = scmp.eq.s32.totalorder %s29, 1
      %p101 = por %p99, %p100
      %p102 = scmp.ne.s32.totalorder %s93, %s94
      %p103 = scmp.eq.s32.totalorder %s29, 0
      %p104 = por %p102, %p103
      %p105 = scmp.ne.s32.totalorder %s93, %s94
      %p106 = scmp.eq.s32.totalorder %s30, 1
      %p107 = por %p105, %p106
      %p109 = scmp.ne.s32.totalorder %s94, %s108
      %p110 = scmp.eq.s32.totalorder %s30, 0
      %p111 = por %p109, %p110
      %s113 = sadd.s32 %s112, 1
      %p116 = scmp.eq.s32.totalorder %s24, 1
      %p117 = scmp.ne.s32.totalorder %s112, %s114
      %p118 = scmp.eq.s32.totalorder %s24, 0
      %p119 = por %p117, %p118
      %p120 = scmp.ne.s32.totalorder %s112, %s114
      %p121 = scmp.eq.s32.totalorder %s29, 1
      %p122 = por %p120, %p121
      %p123 = scmp.ne.s32.totalorder %s114, %s115
      %p124 = scmp.eq.s32.totalorder %s29, 0
      %p125 = por %p123, %p124
      %p126 = scmp.ne.s32.totalorder %s114, %s115
      %p127 = scmp.eq.s32.totalorder %s30, 1
      %p128 = por %p126, %p127
      %p130 = scmp.ne.s32.totalorder %s115, %s129
      %p131 = scmp.eq.s32.totalorder %s30, 0
      %p132 = por %p130, %p131
      %s134 = sadd.s32 %s133, 1
      %p137 = scmp.eq.s32.totalorder %s24, 1
      %p138 = scmp.ne.s32.totalorder %s133, %s135
      %p139 = scmp.eq.s32.totalorder %s24, 0
      %p140 = por %p138, %p139
      %p141 = scmp.ne.s32.totalorder %s133, %s135
      %p142 = scmp.eq.s32.totalorder %s29, 1
      %p143 = por %p141, %p142
      %p144 = scmp.ne.s32.totalorder %s135, %s136
      %p145 = scmp.eq.s32.totalorder %s29, 0
      %p146 = por %p144, %p145
      %p147 = scmp.ne.s32.totalorder %s135, %s136
      %p148 = scmp.eq.s32.totalorder %s30, 1
      %p149 = por %p147, %p148
      %p151 = scmp.ne.s32.totalorder %s136, %s150
      %p152 = scmp.eq.s32.totalorder %s30, 0
      %p153 = por %p151, %p152
      %s155 = sadd.s32 %s154, 1
      %p158 = scmp.eq.s32.totalorder %s24, 1
      %p159 = scmp.ne.s32.totalorder %s154, %s156
      %p160 = scmp.eq.s32.totalorder %s24, 0
      %p161 = por %p159, %p160
      %p162 = scmp.ne.s32.totalorder %s154, %s156
      %p163 = scmp.eq.s32.totalorder %s29, 1
      %p164 = por %p162, %p163
      %p165 = scmp.ne.s32.totalorder %s156, %s157
      %p166 = scmp.eq.s32.totalorder %s29, 0
      %p167 = por %p165, %p166
      %p168 = scmp.ne.s32.totalorder %s156, %s157
      %p169 = scmp.eq.s32.totalorder %s30, 1
      %p170 = por %p168, %p169
      %p172 = scmp.ne.s32.totalorder %s157, %s171
      %p173 = scmp.eq.s32.totalorder %s30, 0
      %p174 = por %p172, %p173
      %s176 = sadd.s32 %s175, 1
      %p179 = scmp.eq.s32.totalorder %s24, 1
      %p180 = scmp.ne.s32.totalorder %s175, %s177
      %p181 = scmp.eq.s32.totalorder %s24, 0
      %p182 = por %p180, %p181
      %p183 = scmp.ne.s32.totalorder %s175, %s177
      %p184 = scmp.eq.s32.totalorder %s29, 1
      %p185 = por %p183, %p184
      %p186 = scmp.ne.s32.totalorder %s177, %s178
      %p187 = scmp.eq.s32.totalorder %s29, 0
      %p188 = por %p186, %p187
      %p189 = scmp.ne.s32.totalorder %s177, %s178
      %p190 = scmp.eq.s32.totalorder %s30, 1
      %p191 = por %p189, %p190
      %p193 = scmp.ne.s32.totalorder %s178, %s192
      %p194 = scmp.eq.s32.totalorder %s30, 0
      %p195 = por %p193, %p194
      %s197 = sadd.s32 %s196, 1
      %p200 = scmp.eq.s32.totalorder %s24, 1
      %p201 = scmp.ne.s32.totalorder %s196, %s198
      %p202 = scmp.eq.s32.totalorder %s24, 0
      %p203 = por %p201, %p202
      %p204 = scmp.ne.s32.totalorder %s196, %s198
      %p205 = scmp.eq.s32.totalorder %s29, 1
      %p206 = por %p204, %p205
      %p207 = scmp.ne.s32.totalorder %s198, %s199
      %p208 = scmp.eq.s32.totalorder %s29, 0
      %p209 = por %p207, %p208
      %p210 = scmp.ne.s32.totalorder %s198, %s199
      %p211 = scmp.eq.s32.totalorder %s30, 1
      %p212 = por %p210, %p211
      %p214 = scmp.ne.s32.totalorder %s199, %s213
      %p215 = scmp.eq.s32.totalorder %s30, 0
      %p216 = por %p214, %p215
      %s218 = sadd.s32 %s217, 1
      %p221 = scmp.eq.s32.totalorder %s24, 1
      %p222 = scmp.ne.s32.totalorder %s217, %s219
      %p223 = scmp.eq.s32.totalorder %s24, 0
      %p224 = por %p222, %p223
      %p225 = scmp.ne.s32.totalorder %s217, %s219
      %p226 = scmp.eq.s32.totalorder %s29, 1
      %p227 = por %p225, %p226
      %p228 = scmp.ne.s32.totalorder %s219, %s220
      %p229 = scmp.eq.s32.totalorder %s29, 0
      %p230 = por %p228, %p229
      %p231 = scmp.ne.s32.totalorder %s219, %s220
      %p232 = scmp.eq.s32.totalorder %s30, 1
      %p233 = por %p231, %p232
      %p235 = scmp.ne.s32.totalorder %s220, %s234
      %p236 = scmp.eq.s32.totalorder %s30, 0
      %p237 = por %p235, %p236
      %s239 = sadd.s32 %s238, 1
      %p242 = scmp.eq.s32.totalorder %s24, 1
      %p243 = scmp.ne.s32.totalorder %s238, %s240
      %p244 = scmp.eq.s32.totalorder %s24, 0
      %p245 = por %p243, %p244
      %p246 = scmp.ne.s32.totalorder %s238, %s240
      %p247 = scmp.eq.s32.totalorder %s29, 1
      %p248 = por %p246, %p247
      %p249 = scmp.ne.s32.totalorder %s240, %s241
      %p250 = scmp.eq.s32.totalorder %s29, 0
      %p251 = por %p249, %p250
      %p252 = scmp.ne.s32.totalorder %s240, %s241
      %p253 = scmp.eq.s32.totalorder %s30, 1
      %p254 = por %p252, %p253
      %p256 = scmp.ne.s32.totalorder %s241, %s255
      %p257 = scmp.eq.s32.totalorder %s30, 0
      %p258 = por %p256, %p257
      %s260 = sadd.s32 %s259, 1
      %p263 = scmp.eq.s32.totalorder %s24, 1
      %p264 = scmp.ne.s32.totalorder %s259, %s261
      %p265 = scmp.eq.s32.totalorder %s24, 0
      %p266 = por %p264, %p265
      %p267 = scmp.ne.s32.totalorder %s259, %s261
      %p268 = scmp.eq.s32.totalorder %s29, 1
      %p269 = por %p267, %p268
      %p270 = scmp.ne.s32.totalorder %s261, %s262
      %p271 = scmp.eq.s32.totalorder %s29, 0
      %p272 = por %p270, %p271
      %p273 = scmp.ne.s32.totalorder %s261, %s262
      %p274 = scmp.eq.s32.totalorder %s30, 1
      %p275 = por %p273, %p274
      %p277 = scmp.ne.s32.totalorder %s262, %s276
      %p278 = scmp.eq.s32.totalorder %s30, 0
      %p279 = por %p277, %p278
      %s280 = ssub.s32 %s31, %s43
      %p281 = scmp.eq.s32.totalorder %s280, 0
      %s283 = sadd.s32 %s282, 1
      %s284 = scalar_select %p281, %s282, %s283
      %p287 = pneg %p281
      %p288 = scmp.eq.s32.totalorder %s24, 1
      %p289 = por %p287, %p288
      %p290 = scmp.ne.s32.totalorder %s282, %s285
      %p291 = scmp.eq.s32.totalorder %s24, 0
      %p292 = por %p290, %p291
      %p293 = scmp.ne.s32.totalorder %s282, %s285
      %p294 = scmp.eq.s32.totalorder %s29, 1
      %p295 = por %p293, %p294
      %p296 = scmp.ne.s32.totalorder %s285, %s286
      %p297 = scmp.eq.s32.totalorder %s29, 0
      %p298 = por %p296, %p297
      %p299 = scmp.ne.s32.totalorder %s285, %s286
      %p300 = scmp.eq.s32.totalorder %s30, 1
      %p301 = por %p299, %p300
      %p303 = scmp.ne.s32.totalorder %s286, %s302
      %p304 = scmp.eq.s32.totalorder %s30, 0
      %p305 = por %p303, %p304
      %p306 = scmp.le.s32.totalorder 1, %s24
      %p307 = scmp.lt.s32.totalorder %s24, 3
      %p308 = pnand %p306, %p307
      %p309 = pneg %p308
      // Predicated region
      $region9: #{tpu_custom_call.1} parent=5 // pred_check
        _
      $region10: #{tpu_custom_call.1} parent=5 // pred_check_branch
        %311 = sbr.rel (%p308) target = $region12
      $region11: #{tpu_custom_call.1} parent=5 // pred_region
        %s312 = ssub.s32 %s24, 1
        // Predicated region
        $region13: #{tpu_custom_call.1} parent=11 // pred_check
          %p313 = pneg %p83
        $region14: #{tpu_custom_call.1} parent=11 // pred_check_branch
          %315 = sbr.rel (%p313) target = $region16
        $region15: #{tpu_custom_call.1} parent=11 // pred_region
          %s317 = ssub.s32 16, 16
          %318 = vsyncadd [#allocation4], %s317
          %s320 = sshll.u32 [#allocation3], 4
          %s321 = int_to_ptr.vmem [resolvable:$true] %s320
          %323 = dma.hbm_to_vmem [thread:$0]  %s1, 16, %s321, [#allocation4]
        $region16: #{tpu_custom_call.1} parent=11 // pred_fallthru
          _
        // Predicated region
        $region17: #{tpu_custom_call.1} parent=11 // pred_check
          %p324 = pneg %p104
        $region18: #{tpu_custom_call.1} parent=11 // pred_check_branch
          %326 = sbr.rel (%p324) target = $region20
        $region19: #{tpu_custom_call.1} parent=11 // pred_region
          %s328 = ssub.s32 16, 16
          %329 = vsyncadd [#allocation7], %s328
          %s331 = sshll.u32 [#allocation6], 4
          %s332 = int_to_ptr.vmem [resolvable:$true] %s331
          %334 = dma.hbm_to_vmem [thread:$0]  %s2, 16, %s332, [#allocation7]
        $region20: #{tpu_custom_call.1} parent=11 // pred_fallthru
          _
        // Predicated region
        $region21: #{tpu_custom_call.1} parent=11 // pred_check
          %p335 = pneg %p125
        $region22: #{tpu_custom_call.1} parent=11 // pred_check_branch
          %337 = sbr.rel (%p335) target = $region24
        $region23: #{tpu_custom_call.1} parent=11 // pred_region
          _
        $region24: #{tpu_custom_call.1} parent=11 // pred_fallthru
          _
        // Predicated region
        $region25: #{tpu_custom_call.1} parent=11 // pred_check
          %p338 = pneg %p146
        $region26: #{tpu_custom_call.1} parent=11 // pred_check_branch
          %340 = sbr.rel (%p338) target = $region28
        $region27: #{tpu_custom_call.1} parent=11 // pred_region
          _
        $region28: #{tpu_custom_call.1} parent=11 // pred_fallthru
          _
        // Predicated region
        $region29: #{tpu_custom_call.1} parent=11 // pred_check
          %p341 = pneg %p167
        $region30: #{tpu_custom_call.1} parent=11 // pred_check_branch
          %343 = sbr.rel (%p341) target = $region32
        $region31: #{tpu_custom_call.1} parent=11 // pred_region
          %s345 = ssub.s32 16, 16
          %346 = vsyncadd [#allocation7], %s345
          %s348 = sshll.u32 [#allocation8], 4
          %s349 = int_to_ptr.vmem [resolvable:$true] %s348
          %351 = dma.hbm_to_vmem [thread:$0]  %s5, 16, %s349, [#allocation7]
        $region32: #{tpu_custom_call.1} parent=11 // pred_fallthru
          _
        // Predicated region
        $region33: #{tpu_custom_call.1} parent=11 // pred_check
          %p352 = pneg %p188
        $region34: #{tpu_custom_call.1} parent=11 // pred_check_branch
          %354 = sbr.rel (%p352) target = $region36
        $region35: #{tpu_custom_call.1} parent=11 // pred_region
          %s356 = ssub.s32 16, 16
          %357 = vsyncadd [#allocation10], %s356
          %s359 = sshll.u32 [#allocation9], 4
          %s360 = int_to_ptr.vmem [resolvable:$true] %s359
          %362 = dma.hbm_to_vmem [thread:$0]  %s6, 16, %s360, [#allocation10]
        $region36: #{tpu_custom_call.1} parent=11 // pred_fallthru
          _
        // Predicated region
        $region37: #{tpu_custom_call.1} parent=11 // pred_check
          %p363 = pneg %p209
        $region38: #{tpu_custom_call.1} parent=11 // pred_check_branch
          %365 = sbr.rel (%p363) target = $region40
        $region39: #{tpu_custom_call.1} parent=11 // pred_region
          %s367 = ssub.s32 256, 256
          %368 = vsyncadd [#allocation10], %s367
          %s369 = sshll.u32 [#allocation11], 4
          %s370 = int_to_ptr.vmem [resolvable:$true] %s369
          %375 = dma.hbm_to_vmem [thread:$0]  %s7, 256, %s370, [#allocation10], 64, 64, 4
        $region40: #{tpu_custom_call.1} parent=11 // pred_fallthru
          _
        // Predicated region
        $region41: #{tpu_custom_call.1} parent=11 // pred_check
          %p376 = pneg %p230
        $region42: #{tpu_custom_call.1} parent=11 // pred_check_branch
          %378 = sbr.rel (%p376) target = $region44
        $region43: #{tpu_custom_call.1} parent=11 // pred_region
          %s380 = ssub.s32 16, 16
          %381 = vsyncadd [#allocation13], %s380
          %s383 = sshll.u32 [#allocation12], 4
          %s384 = int_to_ptr.vmem [resolvable:$true] %s383
          %386 = dma.hbm_to_vmem [thread:$0]  %s8, 16, %s384, [#allocation13]
        $region44: #{tpu_custom_call.1} parent=11 // pred_fallthru
          _
        // Predicated region
        $region45: #{tpu_custom_call.1} parent=11 // pred_check
          %p387 = pneg %p251
        $region46: #{tpu_custom_call.1} parent=11 // pred_check_branch
          %389 = sbr.rel (%p387) target = $region48
        $region47: #{tpu_custom_call.1} parent=11 // pred_region
          _
        $region48: #{tpu_custom_call.1} parent=11 // pred_fallthru
          _
        // Predicated region
        $region49: #{tpu_custom_call.1} parent=11 // pred_check
          %p390 = pneg %p272
        $region50: #{tpu_custom_call.1} parent=11 // pred_check_branch
          %392 = sbr.rel (%p390) target = $region52
        $region51: #{tpu_custom_call.1} parent=11 // pred_region
          _
        $region52: #{tpu_custom_call.1} parent=11 // pred_fallthru
          _
      $region12: #{tpu_custom_call.1} parent=5 // pred_fallthru
        _
      %p393 = scmp.lt.s32.totalorder %s24, 2
      // Predicated region
      $region53: #{tpu_custom_call.1} parent=5 // pred_check
        %p394 = pneg %p393
      $region54: #{tpu_custom_call.1} parent=5 // pred_check_branch
        %396 = sbr.rel (%p394) target = $region56
      $region55: #{tpu_custom_call.1} parent=5 // pred_region
        // Predicated region
        $region57: #{tpu_custom_call.1} parent=55 // pred_check
          %p397 = pneg %p56
        $region58: #{tpu_custom_call.1} parent=55 // pred_check_branch
          %399 = sbr.rel (%p397) target = $region60
        $region59: #{tpu_custom_call.1} parent=55 // pred_region
          %p400 = scmp.lt.s32.totalorder %s31, 1
          %s401 = scalar_select %p400, %s31, 1
          %s402 = smul.addr %s401, 8
          %s403 = scalar_lea.vmem %s0, %s402
        $region60: #{tpu_custom_call.1} parent=55 // pred_fallthru
          _
      $region56: #{tpu_custom_call.1} parent=5 // pred_fallthru
        _
      %p404 = scmp.le.s32.totalorder 1, %s24
      %p405 = scmp.lt.s32.totalorder %s24, 3
      %p406 = pnand %p404, %p405
      %p407 = pneg %p406
      // Predicated region
      $region61: #{tpu_custom_call.1} parent=5 // pred_check
        _
      $region62: #{tpu_custom_call.1} parent=5 // pred_check_branch
        %409 = sbr.rel (%p406) target = $region64
      $region63: #{tpu_custom_call.1} parent=5 // pred_region
        %s410 = ssub.s32 %s24, 1
        // Predicated region
        $region65: #{tpu_custom_call.1} parent=63 // pred_check
          %p411 = pneg %p83
        $region66: #{tpu_custom_call.1} parent=63 // pred_check_branch
          %413 = sbr.rel (%p411) target = $region68
        $region67: #{tpu_custom_call.1} parent=63 // pred_region
          %414 = dma.done [#allocation4], 16
        $region68: #{tpu_custom_call.1} parent=63 // pred_fallthru
          _
        // Predicated region
        $region69: #{tpu_custom_call.1} parent=63 // pred_check
          %p415 = pneg %p104
        $region70: #{tpu_custom_call.1} parent=63 // pred_check_branch
          %417 = sbr.rel (%p415) target = $region72
        $region71: #{tpu_custom_call.1} parent=63 // pred_region
          %418 = dma.done [#allocation7], 16
        $region72: #{tpu_custom_call.1} parent=63 // pred_fallthru
          _
        // Predicated region
        $region73: #{tpu_custom_call.1} parent=63 // pred_check
          %p419 = pneg %p167
        $region74: #{tpu_custom_call.1} parent=63 // pred_check_branch
          %421 = sbr.rel (%p419) target = $region76
        $region75: #{tpu_custom_call.1} parent=63 // pred_region
          %422 = dma.done [#allocation7], 16
        $region76: #{tpu_custom_call.1} parent=63 // pred_fallthru
          _
        // Predicated region
        $region77: #{tpu_custom_call.1} parent=63 // pred_check
          %p423 = pneg %p188
        $region78: #{tpu_custom_call.1} parent=63 // pred_check_branch
          %425 = sbr.rel (%p423) target = $region80
        $region79: #{tpu_custom_call.1} parent=63 // pred_region
          %426 = dma.done [#allocation10], 16
        $region80: #{tpu_custom_call.1} parent=63 // pred_fallthru
          _
        // Predicated region
        $region81: #{tpu_custom_call.1} parent=63 // pred_check
          %p427 = pneg %p209
        $region82: #{tpu_custom_call.1} parent=63 // pred_check_branch
          %429 = sbr.rel (%p427) target = $region84
        $region83: #{tpu_custom_call.1} parent=63 // pred_region
          %430 = dma.done [#allocation10], 256
        $region84: #{tpu_custom_call.1} parent=63 // pred_fallthru
          _
        // Predicated region
        $region85: #{tpu_custom_call.1} parent=63 // pred_check
          %p431 = pneg %p230
        $region86: #{tpu_custom_call.1} parent=63 // pred_check_branch
          %433 = sbr.rel (%p431) target = $region88
        $region87: #{tpu_custom_call.1} parent=63 // pred_region
          %434 = dma.done [#allocation13], 16
        $region88: #{tpu_custom_call.1} parent=63 // pred_fallthru
          _
        %p435 = scmp.lt.s32.totalorder %s33, 1
        %s436 = scalar_select %p435, %s33, 1
        %s437 = smul.addr %s436, 8
        %s438 = scalar_lea.vmem %s0, %s437
        %p439 = pneg %p62
        %p440 = pneg %p59
        %p441 = pneg %p83
        %p442 = pneg %p80
        %p443 = pneg %p104
        %p444 = pneg %p101
        %p445 = pneg %p125
        %p446 = pneg %p122
        %p447 = pneg %p146
        %p448 = pneg %p143
        %p449 = pneg %p167
        %p450 = pneg %p164
        %p451 = pneg %p188
        %p452 = pneg %p185
        %p453 = pneg %p209
        %p454 = pneg %p206
        %p455 = pneg %p230
        %p456 = pneg %p227
        %p457 = pneg %p251
        %p458 = pneg %p248
        %p459 = pneg %p272
        %p460 = pneg %p269
        %p461 = pneg %p298
        %p462 = pneg %p295
        %s463 = sand.u32 %s285, 1
        %s464 = scalar_lea.sflag [#allocation5], %s463
        %s465 = sand.u32 %s285, 1
        %s466 = smul.addr %s465, 8
        %s467 = scalar_lea.vmem [#allocation14], %s466
        %p468 = scmp.lt.s32.totalorder %s33, 1
        %s469 = scalar_select %p468, %s33, 1
        %s470 = smul.addr %s469, 8
        %s471 = scalar_lea.vmem %s0, %s470
        %p473 = scmp.eq.s32.totalorder %s34, 0
        // Predicated region
        $region89: #{tpu_custom_call.1} parent=63 // pred_check
          %p474 = pneg %p473
        $region90: #{tpu_custom_call.1} parent=63 // pred_check_branch
          %476 = sbr.rel (%p474) target = $region92
        $region91: #{tpu_custom_call.1} parent=63 // pred_region
          %v477 = vld [vmem:[%s471] sm:$0xff]
          %v478 = vld [vmem:[#allocation3] sm:$0x1]
          %v479 = vld [vmem:[#allocation6] sm:$0x1]
          %vm480 = vcmask 261120
          %v481 = vsel %vm480, %v477, 0.0
          %482 = vadd.xlane.f32.xlu0 %v481
          %v483 = vpop.xlane.xlu0 %482
          %v484 = vrcp.pop 32.0
          %v485 = vmul.f32 %v483, %v484
          %v486 = vsub.f32 %v477, %v485
          %v487 = vmul.f32 %v486, %v486
          %v488 = vsel %vm480, %v487, 0.0
          %489 = vadd.xlane.f32.xlu0 %v488
          %v490 = vpop.xlane.xlu0 %489
          %v491 = vmul.f32 %v490, %v484
          %v492 = vadd.f32 %v491, 1e-05
          %v493 = vrsqrt.pop %v492
          %v494 = vmul.f32 %v486, %v493
          %v496 = vlaneseq
          %v497 = vshrl.u32 %v496, 7
          %v498 = vsub.s32 0, %v497
          %v499 = vrot.slane %v478, %v498
          %v501 = vmul.f32 %v494, %v499
          %v503 = vlaneseq
          %v504 = vshrl.u32 %v503, 7
          %v505 = vsub.s32 0, %v504
          %v506 = vrot.slane %v479, %v505
          %v508 = vadd.f32 %v501, %v506
          %v509 = vpack.c.bf16 %v508, %v508
          %v510 = vld [vmem:[%s3] sm:$0xf]
          %v511 = vld [vmem:[%s3 + $0x4] sm:$0xf]
          %v512 = vld [vmem:[%s3 + $0x8] sm:$0xf]
          %v513 = vld [vmem:[%s3 + $0xc] sm:$0xf]
          %v518 = vunpack.c.l.b16 %v510
          %v519 = vunpack.c.l.b16 %v511
          %v520 = vunpack.c.l.b16 %v512
          %v521 = vunpack.c.l.b16 %v513
          %v522 = vpack.c.b16 %v519, %v518
          %v523 = vpack.c.b16 %v521, %v520
          %v527 = vsel %vm480, %v509, 0
          %529 = vmatprep.subr.bf16.mxu0 0
          %530 = vmatpush1.bf16.msra.mxu0 0
          %531 = vmatprep.subr.bf16.mxu0 0
          %532 = vmatpush1.bf16.msra.mxu0 0
          %533 = vmatprep.subr.bf16.mxu0 0
          %534 = vmatpush1.bf16.msra.mxu0 0
          %535 = vmatprep.subr.bf16.mxu0 0
          %536 = vmatpush1.bf16.msra.mxu0 0
          %537 = vmatprep.subr.bf16.mxu0 0
          %538 = vmatpush1.bf16.msra.mxu0 0
          %539 = vmatprep.subr.bf16.mxu0 0
          %540 = vmatpush1.bf16.msra.mxu0 0
          %541 = vmatprep.subr.bf16.mxu0 0
          %542 = vmatpush1.bf16.msra.mxu0 %v523
          %543 = vmatprep.subr.bf16.mxu0 0
          %544 = vmatpush1.bf16.msra.mxu0 %v522
          %545 = vmatprep.subr.bf16.mxu0 0
          %546 = vmatpush2.bf16.msra.mxu0 0
          %547 = vmatprep.subr.bf16.mxu0 0
          %548 = vmatpush2.bf16.msra.mxu0 0
          %549 = vmatprep.subr.bf16.mxu0 0
          %550 = vmatpush2.bf16.msra.mxu0 0
          %551 = vmatprep.subr.bf16.mxu0 0
          %552 = vmatpush2.bf16.msra.mxu0 0
          %553 = vmatprep.subr.bf16.mxu0 0
          %554 = vmatpush2.bf16.msra.mxu0 0
          %555 = vmatprep.subr.bf16.mxu0 0
          %556 = vmatpush2.bf16.msra.mxu0 0
          %557 = vmatprep.subr.bf16.mxu0 0
          %558 = vmatpush2.bf16.msra.mxu0 0
          %559 = vmatprep.subr.bf16.mxu0 0
          %560 = vmatpush2.bf16.msra.mxu0 0
          %561 = vmatprep.mubr.bf16.mxu0 0
          %562 = vmatmul.mubr.bf16.gmra.mxu0 %v527
          %v563 = vpop.f32.mrf.mxu0
          %v564 = vadd.f32 0.0, %v563
          %v565 = vpop.f32.mrf.mxu0
          %v566 = vpop.f32.mrf.mxu0
          %v567 = vpop.f32.mrf.mxu0
          %568 = vdwg.mxu0
          %v569 = vpack.c.bf16 %v564, %v564
          %571 = vrot.lane.b32.xlu0 %v569, 120
          %v572 = vpop.permute.xlu0 %571
          %573 = vrot.lane.b32.xlu0 %v569, 112
          %v574 = vpop.permute.xlu0 %573
          %575 = vrot.lane.b32.xlu0 %v569, 104
          %v576 = vpop.permute.xlu0 %575
          %v578 = vunpack.c.l.s4 1983009808
          %v579 = vunpack.c.0.s8 %v578
          %v580 = vlaneseq
          %v581 = vshrl.u32 %v580, 7
          %v582 = vsub.s32 %v579, %v581
          %v583 = vrot.slane %v569, %v582
          %v586 = vunpack.c.l.s4 1983009808
          %v587 = vunpack.c.0.s8 %v586
          %v588 = vlaneseq
          %v589 = vshrl.u32 %v588, 7
          %v590 = vsub.s32 %v587, %v589
          %v591 = vrot.slane %v574, %v590
          %v592 = vcombine.low %v583, %v591
          %v593 = vcombine.high %v583, %v591
          %v595 = vunpack.c.l.s4 1934713408
          %v596 = vunpack.c.0.s8 %v595
          %v597 = vlaneseq
          %v598 = vshrl.u32 %v597, 7
          %v599 = vsub.s32 %v596, %v598
          %v600 = vrot.slane %v592, %v599
          %v602 = vunpack.c.l.s4 1934713408
          %v603 = vunpack.c.0.s8 %v602
          %v604 = vlaneseq
          %v605 = vshrl.u32 %v604, 7
          %v606 = vsub.s32 %v603, %v605
          %v607 = vrot.slane %v593, %v606
          %v608 = vcombine.high %v600, 0
          %v609 = vcombine.high %v607, 0
          %v612 = vunpack.c.l.s4 1983009808
          %v613 = vunpack.c.0.s8 %v612
          %v614 = vlaneseq
          %v615 = vshrl.u32 %v614, 7
          %v616 = vsub.s32 %v613, %v615
          %v617 = vrot.slane %v572, %v616
          %v620 = vunpack.c.l.s4 1983009808
          %v621 = vunpack.c.0.s8 %v620
          %v622 = vlaneseq
          %v623 = vshrl.u32 %v622, 7
          %v624 = vsub.s32 %v621, %v623
          %v625 = vrot.slane %v576, %v624
          %v626 = vcombine.low %v617, %v625
          %v627 = vcombine.high %v617, %v625
          %v629 = vunpack.c.l.s4 1934713408
          %v630 = vunpack.c.0.s8 %v629
          %v631 = vlaneseq
          %v632 = vshrl.u32 %v631, 7
          %v633 = vsub.s32 %v630, %v632
          %v634 = vrot.slane %v626, %v633
          %v636 = vunpack.c.l.s4 1934713408
          %v637 = vunpack.c.0.s8 %v636
          %v638 = vlaneseq
          %v639 = vshrl.u32 %v638, 7
          %v640 = vsub.s32 %v637, %v639
          %v641 = vrot.slane %v627, %v640
          %v642 = vcombine.high %v634, 0
          %v643 = vcombine.high %v641, 0
          %v646 = vpack.i.b16 %v634, %v600
          %v648 = vshrl.u32 %v600, 16
          %v649 = vshrl.u32 %v634, 16
          %v650 = vpack.i.b16 %v649, %v648
          %v654 = vpack.i.b16 %v642, %v608
          %v656 = vshrl.u32 %v608, 16
          %v657 = vshrl.u32 %v642, 16
          %v658 = vpack.i.b16 %v657, %v656
          %v662 = vpack.i.b16 %v641, %v607
          %v664 = vshrl.u32 %v607, 16
          %v665 = vshrl.u32 %v641, 16
          %v666 = vpack.i.b16 %v665, %v664
          %v670 = vpack.i.b16 %v643, %v609
          %v672 = vshrl.u32 %v609, 16
          %v673 = vshrl.u32 %v643, 16
          %v674 = vpack.i.b16 %v673, %v672
          %v676 = vcombine.low %v646, %v662
          %v678 = vunpack.c.l.s4 1983009808
          %v679 = vunpack.c.0.s8 %v678
          %v680 = vlaneseq
          %v681 = vshrl.u32 %v680, 7
          %v682 = vsub.s32 %v679, %v681
          %v683 = vrot.slane %v676, %v682
          %v684 = vcombine.low %v654, %v670
          %v686 = vunpack.c.l.s4 1983009808
          %v687 = vunpack.c.0.s8 %v686
          %v688 = vlaneseq
          %v689 = vshrl.u32 %v688, 7
          %v690 = vsub.s32 %v687, %v689
          %v691 = vrot.slane %v684, %v690
          %v692 = vcombine.low %v683, %v691
          %v694 = vunpack.c.l.s4 1934713408
          %v695 = vunpack.c.0.s8 %v694
          %v696 = vlaneseq
          %v697 = vshrl.u32 %v696, 7
          %v698 = vsub.s32 %v695, %v697
          %v699 = vrot.slane %v692, %v698
          %v700 = vcombine.high %v699, 0
          %v701 = vcombine.low %v650, %v666
          %v703 = vunpack.c.l.s4 1983009808
          %v704 = vunpack.c.0.s8 %v703
          %v705 = vlaneseq
          %v706 = vshrl.u32 %v705, 7
          %v707 = vsub.s32 %v704, %v706
          %v708 = vrot.slane %v701, %v707
          %v709 = vcombine.low %v658, %v674
          %v711 = vunpack.c.l.s4 1983009808
          %v712 = vunpack.c.0.s8 %v711
          %v713 = vlaneseq
          %v714 = vshrl.u32 %v713, 7
          %v715 = vsub.s32 %v712, %v714
          %v716 = vrot.slane %v709, %v715
          %v717 = vcombine.low %v708, %v716
          %v719 = vunpack.c.l.s4 1934713408
          %v720 = vunpack.c.0.s8 %v719
          %v721 = vlaneseq
          %v722 = vshrl.u32 %v721, 7
          %v723 = vsub.s32 %v720, %v722
          %v724 = vrot.slane %v717, %v723
          %v725 = vcombine.high %v724, 0
          %v728 = vpack.i.b16 %v724, %v699
          %v729 = vshrl.u32 %v699, 16
          %v730 = vshrl.u32 %v724, 16
          %v731 = vpack.i.b16 %v730, %v729
          %v734 = vpack.i.b16 %v725, %v700
          %v735 = vshrl.u32 %v700, 16
          %v736 = vshrl.u32 %v725, 16
          %v737 = vpack.i.b16 %v736, %v735
          %738 = vrot.lane.b32.xlu0 %v569, 96
          %v739 = vpop.permute.xlu0 %738
          %740 = vrot.lane.b32.xlu0 %v572, 96
          %v741 = vpop.permute.xlu0 %740
          %742 = vrot.lane.b32.xlu0 %v574, 96
          %v743 = vpop.permute.xlu0 %742
          %744 = vrot.lane.b32.xlu0 %v576, 96
          %v745 = vpop.permute.xlu0 %744
          %v748 = vunpack.c.l.s4 1983009808
          %v749 = vunpack.c.0.s8 %v748
          %v750 = vlaneseq
          %v751 = vshrl.u32 %v750, 7
          %v752 = vsub.s32 %v749, %v751
          %v753 = vrot.slane %v739, %v752
          %v756 = vunpack.c.l.s4 1983009808
          %v757 = vunpack.c.0.s8 %v756
          %v758 = vlaneseq
          %v759 = vshrl.u32 %v758, 7
          %v760 = vsub.s32 %v757, %v759
          %v761 = vrot.slane %v743, %v760
          %v762 = vcombine.low %v753, %v761
          %v763 = vcombine.high %v753, %v761
          %v765 = vunpack.c.l.s4 1934713408
          %v766 = vunpack.c.0.s8 %v765
          %v767 = vlaneseq
          %v768 = vshrl.u32 %v767, 7
          %v769 = vsub.s32 %v766, %v768
          %v770 = vrot.slane %v762, %v769
          %v772 = vunpack.c.l.s4 1934713408
          %v773 = vunpack.c.0.s8 %v772
          %v774 = vlaneseq
          %v775 = vshrl.u32 %v774, 7
          %v776 = vsub.s32 %v773, %v775
          %v777 = vrot.slane %v763, %v776
          %v778 = vcombine.high %v770, 0
          %v779 = vcombine.high %v777, 0
          %v782 = vunpack.c.l.s4 1983009808
          %v783 = vunpack.c.0.s8 %v782
          %v784 = vlaneseq
          %v785 = vshrl.u32 %v784, 7
          %v786 = vsub.s32 %v783, %v785
          %v787 = vrot.slane %v741, %v786
          %v790 = vunpack.c.l.s4 1983009808
          %v791 = vunpack.c.0.s8 %v790
          %v792 = vlaneseq
          %v793 = vshrl.u32 %v792, 7
          %v794 = vsub.s32 %v791, %v793
          %v795 = vrot.slane %v745, %v794
          %v796 = vcombine.low %v787, %v795
          %v797 = vcombine.high %v787, %v795
          %v799 = vunpack.c.l.s4 1934713408
          %v800 = vunpack.c.0.s8 %v799
          %v801 = vlaneseq
          %v802 = vshrl.u32 %v801, 7
          %v803 = vsub.s32 %v800, %v802
          %v804 = vrot.slane %v796, %v803
          %v806 = vunpack.c.l.s4 1934713408
          %v807 = vunpack.c.0.s8 %v806
          %v808 = vlaneseq
          %v809 = vshrl.u32 %v808, 7
          %v810 = vsub.s32 %v807, %v809
          %v811 = vrot.slane %v797, %v810
          %v812 = vcombine.high %v804, 0
          %v813 = vcombine.high %v811, 0
          %v816 = vpack.i.b16 %v804, %v770
          %v818 = vshrl.u32 %v770, 16
          %v819 = vshrl.u32 %v804, 16
          %v820 = vpack.i.b16 %v819, %v818
          %v824 = vpack.i.b16 %v812, %v778
          %v826 = vshrl.u32 %v778, 16
          %v827 = vshrl.u32 %v812, 16
          %v828 = vpack.i.b16 %v827, %v826
          %v832 = vpack.i.b16 %v811, %v777
          %v834 = vshrl.u32 %v777, 16
          %v835 = vshrl.u32 %v811, 16
          %v836 = vpack.i.b16 %v835, %v834
          %v840 = vpack.i.b16 %v813, %v779
          %v842 = vshrl.u32 %v779, 16
          %v843 = vshrl.u32 %v813, 16
          %v844 = vpack.i.b16 %v843, %v842
          %v846 = vcombine.low %v816, %v832
          %v848 = vunpack.c.l.s4 1983009808
          %v849 = vunpack.c.0.s8 %v848
          %v850 = vlaneseq
          %v851 = vshrl.u32 %v850, 7
          %v852 = vsub.s32 %v849, %v851
          %v853 = vrot.slane %v846, %v852
          %v854 = vcombine.low %v824, %v840
          %v856 = vunpack.c.l.s4 1983009808
          %v857 = vunpack.c.0.s8 %v856
          %v858 = vlaneseq
          %v859 = vshrl.u32 %v858, 7
          %v860 = vsub.s32 %v857, %v859
          %v861 = vrot.slane %v854, %v860
          %v862 = vcombine.low %v853, %v861
          %v864 = vunpack.c.l.s4 1934713408
          %v865 = vunpack.c.0.s8 %v864
          %v866 = vlaneseq
          %v867 = vshrl.u32 %v866, 7
          %v868 = vsub.s32 %v865, %v867
          %v869 = vrot.slane %v862, %v868
          %v870 = vcombine.high %v869, 0
          %v871 = vcombine.low %v820, %v836
          %v873 = vunpack.c.l.s4 1983009808
          %v874 = vunpack.c.0.s8 %v873
          %v875 = vlaneseq
          %v876 = vshrl.u32 %v875, 7
          %v877 = vsub.s32 %v874, %v876
          %v878 = vrot.slane %v871, %v877
          %v879 = vcombine.low %v828, %v844
          %v881 = vunpack.c.l.s4 1983009808
          %v882 = vunpack.c.0.s8 %v881
          %v883 = vlaneseq
          %v884 = vshrl.u32 %v883, 7
          %v885 = vsub.s32 %v882, %v884
          %v886 = vrot.slane %v879, %v885
          %v887 = vcombine.low %v878, %v886
          %v889 = vunpack.c.l.s4 1934713408
          %v890 = vunpack.c.0.s8 %v889
          %v891 = vlaneseq
          %v892 = vshrl.u32 %v891, 7
          %v893 = vsub.s32 %v890, %v892
          %v894 = vrot.slane %v887, %v893
          %v895 = vcombine.high %v894, 0
          %v898 = vpack.i.b16 %v894, %v869
          %v899 = vshrl.u32 %v869, 16
          %v900 = vshrl.u32 %v894, 16
          %v901 = vpack.i.b16 %v900, %v899
          %v904 = vpack.i.b16 %v895, %v870
          %v905 = vshrl.u32 %v870, 16
          %v906 = vshrl.u32 %v895, 16
          %v907 = vpack.i.b16 %v906, %v905
          %908 = vrot.lane.b32.xlu0 %v569, 64
          %v909 = vpop.permute.xlu0 %908
          %910 = vrot.lane.b32.xlu0 %v572, 64
          %v911 = vpop.permute.xlu0 %910
          %912 = vrot.lane.b32.xlu0 %v574, 64
          %v913 = vpop.permute.xlu0 %912
          %914 = vrot.lane.b32.xlu0 %v576, 64
          %v915 = vpop.permute.xlu0 %914
          %v918 = vunpack.c.l.s4 1983009808
          %v919 = vunpack.c.0.s8 %v918
          %v920 = vlaneseq
          %v921 = vshrl.u32 %v920, 7
          %v922 = vsub.s32 %v919, %v921
          %v923 = vrot.slane %v909, %v922
          %v926 = vunpack.c.l.s4 1983009808
          %v927 = vunpack.c.0.s8 %v926
          %v928 = vlaneseq
          %v929 = vshrl.u32 %v928, 7
          %v930 = vsub.s32 %v927, %v929
          %v931 = vrot.slane %v913, %v930
          %v932 = vcombine.low %v923, %v931
          %v933 = vcombine.high %v923, %v931
          %v935 = vunpack.c.l.s4 1934713408
          %v936 = vunpack.c.0.s8 %v935
          %v937 = vlaneseq
          %v938 = vshrl.u32 %v937, 7
          %v939 = vsub.s32 %v936, %v938
          %v940 = vrot.slane %v932, %v939
          %v942 = vunpack.c.l.s4 1934713408
          %v943 = vunpack.c.0.s8 %v942
          %v944 = vlaneseq
          %v945 = vshrl.u32 %v944, 7
          %v946 = vsub.s32 %v943, %v945
          %v947 = vrot.slane %v933, %v946
          %v948 = vcombine.high %v940, 0
          %v949 = vcombine.high %v947, 0
          %v952 = vunpack.c.l.s4 1983009808
          %v953 = vunpack.c.0.s8 %v952
          %v954 = vlaneseq
          %v955 = vshrl.u32 %v954, 7
          %v956 = vsub.s32 %v953, %v955
          %v957 = vrot.slane %v911, %v956
          %v960 = vunpack.c.l.s4 1983009808
          %v961 = vunpack.c.0.s8 %v960
          %v962 = vlaneseq
          %v963 = vshrl.u32 %v962, 7
          %v964 = vsub.s32 %v961, %v963
          %v965 = vrot.slane %v915, %v964
          %v966 = vcombine.low %v957, %v965
          %v967 = vcombine.high %v957, %v965
          %v969 = vunpack.c.l.s4 1934713408
          %v970 = vunpack.c.0.s8 %v969
          %v971 = vlaneseq
          %v972 = vshrl.u32 %v971, 7
          %v973 = vsub.s32 %v970, %v972
          %v974 = vrot.slane %v966, %v973
          %v976 = vunpack.c.l.s4 1934713408
          %v977 = vunpack.c.0.s8 %v976
          %v978 = vlaneseq
          %v979 = vshrl.u32 %v978, 7
          %v980 = vsub.s32 %v977, %v979
          %v981 = vrot.slane %v967, %v980
          %v982 = vcombine.high %v974, 0
          %v983 = vcombine.high %v981, 0
          %v986 = vpack.i.b16 %v974, %v940
          %v988 = vshrl.u32 %v940, 16
          %v989 = vshrl.u32 %v974, 16
          %v990 = vpack.i.b16 %v989, %v988
          %v994 = vpack.i.b16 %v982, %v948
          %v996 = vshrl.u32 %v948, 16
          %v997 = vshrl.u32 %v982, 16
          %v998 = vpack.i.b16 %v997, %v996
          %v1002 = vpack.i.b16 %v981, %v947
          %v1004 = vshrl.u32 %v947, 16
          %v1005 = vshrl.u32 %v981, 16
          %v1006 = vpack.i.b16 %v1005, %v1004
          %v1010 = vpack.i.b16 %v983, %v949
          %v1012 = vshrl.u32 %v949, 16
          %v1013 = vshrl.u32 %v983, 16
          %v1014 = vpack.i.b16 %v1013, %v1012
          %v1016 = vcombine.low %v986, %v1002
          %v1018 = vunpack.c.l.s4 1983009808
          %v1019 = vunpack.c.0.s8 %v1018
          %v1020 = vlaneseq
          %v1021 = vshrl.u32 %v1020, 7
          %v1022 = vsub.s32 %v1019, %v1021
          %v1023 = vrot.slane %v1016, %v1022
          %v1024 = vcombine.low %v994, %v1010
          %v1026 = vunpack.c.l.s4 1983009808
          %v1027 = vunpack.c.0.s8 %v1026
          %v1028 = vlaneseq
          %v1029 = vshrl.u32 %v1028, 7
          %v1030 = vsub.s32 %v1027, %v1029
          %v1031 = vrot.slane %v1024, %v1030
          %v1032 = vcombine.low %v1023, %v1031
          %v1034 = vunpack.c.l.s4 1934713408
          %v1035 = vunpack.c.0.s8 %v1034
          %v1036 = vlaneseq
          %v1037 = vshrl.u32 %v1036, 7
          %v1038 = vsub.s32 %v1035, %v1037
          %v1039 = vrot.slane %v1032, %v1038
          %v1040 = vcombine.high %v1039, 0
          %v1041 = vcombine.low %v990, %v1006
          %v1043 = vunpack.c.l.s4 1983009808
          %v1044 = vunpack.c.0.s8 %v1043
          %v1045 = vlaneseq
          %v1046 = vshrl.u32 %v1045, 7
          %v1047 = vsub.s32 %v1044, %v1046
          %v1048 = vrot.slane %v1041, %v1047
          %v1049 = vcombine.low %v998, %v1014
          %v1051 = vunpack.c.l.s4 1983009808
          %v1052 = vunpack.c.0.s8 %v1051
          %v1053 = vlaneseq
          %v1054 = vshrl.u32 %v1053, 7
          %v1055 = vsub.s32 %v1052, %v1054
          %v1056 = vrot.slane %v1049, %v1055
          %v1057 = vcombine.low %v1048, %v1056
          %v1059 = vunpack.c.l.s4 1934713408
          %v1060 = vunpack.c.0.s8 %v1059
          %v1061 = vlaneseq
          %v1062 = vshrl.u32 %v1061, 7
          %v1063 = vsub.s32 %v1060, %v1062
          %v1064 = vrot.slane %v1057, %v1063
          %v1065 = vcombine.high %v1064, 0
          %v1068 = vpack.i.b16 %v1064, %v1039
          %v1069 = vshrl.u32 %v1039, 16
          %v1070 = vshrl.u32 %v1064, 16
          %v1071 = vpack.i.b16 %v1070, %v1069
          %v1074 = vpack.i.b16 %v1065, %v1040
          %v1075 = vshrl.u32 %v1040, 16
          %v1076 = vshrl.u32 %v1065, 16
          %v1077 = vpack.i.b16 %v1076, %v1075
          %vm1078 = vcmask 64512
          %v1080 = vsel %vm1078, %v728, 0
          %v1083 = vsel %vm1078, %v898, 0
          %1085 = vmatprep.subr.bf16.mxu0 0
          %1086 = vmatpush1.bf16.xpose.msra.mxu0 0
          %1087 = vmatprep.subr.bf16.mxu0 0
          %1088 = vmatpush1.bf16.xpose.msra.mxu0 0
          %1089 = vmatprep.subr.bf16.mxu0 0
          %1090 = vmatpush1.bf16.xpose.msra.mxu0 0
          %1091 = vmatprep.subr.bf16.mxu0 0
          %1092 = vmatpush1.bf16.xpose.msra.mxu0 0
          %1093 = vmatprep.subr.bf16.mxu0 0
          %1094 = vmatpush1.bf16.xpose.msra.mxu0 0
          %1095 = vmatprep.subr.bf16.mxu0 0
          %1096 = vmatpush1.bf16.xpose.msra.mxu0 0
          %1097 = vmatprep.subr.bf16.mxu0 0
          %1098 = vmatpush1.bf16.xpose.msra.mxu0 0
          %1099 = vmatprep.subr.bf16.mxu0 0
          %1100 = vmatpush1.bf16.xpose.msra.mxu0 %v1083
          %1101 = vmatprep.subr.bf16.mxu0 0
          %1102 = vmatpush2.bf16.xpose.msra.mxu0 0
          %1103 = vmatprep.subr.bf16.mxu0 0
          %1104 = vmatpush2.bf16.xpose.msra.mxu0 0
          %1105 = vmatprep.subr.bf16.mxu0 0
          %1106 = vmatpush2.bf16.xpose.msra.mxu0 0
          %1107 = vmatprep.subr.bf16.mxu0 0
          %1108 = vmatpush2.bf16.xpose.msra.mxu0 0
          %1109 = vmatprep.subr.bf16.mxu0 0
          %1110 = vmatpush2.bf16.xpose.msra.mxu0 0
          %1111 = vmatprep.subr.bf16.mxu0 0
          %1112 = vmatpush2.bf16.xpose.msra.mxu0 0
          %1113 = vmatprep.subr.bf16.mxu0 0
          %1114 = vmatpush2.bf16.xpose.msra.mxu0 0
          %1115 = vmatprep.subr.bf16.mxu0 0
          %1116 = vmatpush2.bf16.xpose.msra.mxu0 0
          %1117 = vmatprep.mubr.bf16.mxu0 0
          %1118 = vmatmul.mubr.bf16.gmra.mxu0 %v1080
          %v1119 = vpop.f32.mrf.mxu0
          %v1120 = vadd.f32 0.0, %v1119
          %v1121 = vpop.f32.mrf.mxu0
          %v1122 = vpop.f32.mrf.mxu0
          %v1123 = vpop.f32.mrf.mxu0
          %1124 = vdwg.mxu0
          %v1126 = vsel %vm1078, %v731, 0
          %v1129 = vsel %vm1078, %v901, 0
          %1131 = vmatprep.subr.bf16.mxu0 0
          %1132 = vmatpush1.bf16.xpose.msra.mxu0 0
          %1133 = vmatprep.subr.bf16.mxu0 0
          %1134 = vmatpush1.bf16.xpose.msra.mxu0 0
          %1135 = vmatprep.subr.bf16.mxu0 0
          %1136 = vmatpush1.bf16.xpose.msra.mxu0 0
          %1137 = vmatprep.subr.bf16.mxu0 0
          %1138 = vmatpush1.bf16.xpose.msra.mxu0 0
          %1139 = vmatprep.subr.bf16.mxu0 0
          %1140 = vmatpush1.bf16.xpose.msra.mxu0 0
          %1141 = vmatprep.subr.bf16.mxu0 0
          %1142 = vmatpush1.bf16.xpose.msra.mxu0 0
          %1143 = vmatprep.subr.bf16.mxu0 0
          %1144 = vmatpush1.bf16.xpose.msra.mxu0 0
          %1145 = vmatprep.subr.bf16.mxu0 0
          %1146 = vmatpush1.bf16.xpose.msra.mxu0 %v1129
          %1147 = vmatprep.subr.bf16.mxu0 0
          %1148 = vmatpush2.bf16.xpose.msra.mxu0 0
          %1149 = vmatprep.subr.bf16.mxu0 0
          %1150 = vmatpush2.bf16.xpose.msra.mxu0 0
          %1151 = vmatprep.subr.bf16.mxu0 0
          %1152 = vmatpush2.bf16.xpose.msra.mxu0 0
          %1153 = vmatprep.subr.bf16.mxu0 0
          %1154 = vmatpush2.bf16.xpose.msra.mxu0 0
          %1155 = vmatprep.subr.bf16.mxu0 0
          %1156 = vmatpush2.bf16.xpose.msra.mxu0 0
          %1157 = vmatprep.subr.bf16.mxu0 0
          %1158 = vmatpush2.bf16.xpose.msra.mxu0 0
          %1159 = vmatprep.subr.bf16.mxu0 0
          %1160 = vmatpush2.bf16.xpose.msra.mxu0 0
          %1161 = vmatprep.subr.bf16.mxu0 0
          %1162 = vmatpush2.bf16.xpose.msra.mxu0 0
          %1163 = vmatprep.mubr.bf16.mxu0 0
          %1164 = vmatmul.mubr.bf16.gmra.mxu0 %v1126
          %v1165 = vpop.f32.mrf.mxu0
          %v1166 = vadd.f32 0.0, %v1165
          %v1167 = vpop.f32.mrf.mxu0
          %v1168 = vpop.f32.mrf.mxu0
          %v1169 = vpop.f32.mrf.mxu0
          %1170 = vdwg.mxu0
          %v1172 = vsel %vm1078, %v734, 0
          %v1175 = vsel %vm1078, %v904, 0
          %1177 = vmatprep.subr.bf16.mxu0 0
          %1178 = vmatpush1.bf16.xpose.msra.mxu0 0
          %1179 = vmatprep.subr.bf16.mxu0 0
          %1180 = vmatpush1.bf16.xpose.msra.mxu0 0
          %1181 = vmatprep.subr.bf16.mxu0 0
          %1182 = vmatpush1.bf16.xpose.msra.mxu0 0
          %1183 = vmatprep.subr.bf16.mxu0 0
          %1184 = vmatpush1.bf16.xpose.msra.mxu0 0
          %1185 = vmatprep.subr.bf16.mxu0 0
          %1186 = vmatpush1.bf16.xpose.msra.mxu0 0
          %1187 = vmatprep.subr.bf16.mxu0 0
          %1188 = vmatpush1.bf16.xpose.msra.mxu0 0
          %1189 = vmatprep.subr.bf16.mxu0 0
          %1190 = vmatpush1.bf16.xpose.msra.mxu0 0
          %1191 = vmatprep.subr.bf16.mxu0 0
          %1192 = vmatpush1.bf16.xpose.msra.mxu0 %v1175
          %1193 = vmatprep.subr.bf16.mxu0 0
          %1194 = vmatpush2.bf16.xpose.msra.mxu0 0
          %1195 = vmatprep.subr.bf16.mxu0 0
          %1196 = vmatpush2.bf16.xpose.msra.mxu0 0
          %1197 = vmatprep.subr.bf16.mxu0 0
          %1198 = vmatpush2.bf16.xpose.msra.mxu0 0
          %1199 = vmatprep.subr.bf16.mxu0 0
          %1200 = vmatpush2.bf16.xpose.msra.mxu0 0
          %1201 = vmatprep.subr.bf16.mxu0 0
          %1202 = vmatpush2.bf16.xpose.msra.mxu0 0
          %1203 = vmatprep.subr.bf16.mxu0 0
          %1204 = vmatpush2.bf16.xpose.msra.mxu0 0
          %1205 = vmatprep.subr.bf16.mxu0 0
          %1206 = vmatpush2.bf16.xpose.msra.mxu0 0
          %1207 = vmatprep.subr.bf16.mxu0 0
          %1208 = vmatpush2.bf16.xpose.msra.mxu0 0
          %1209 = vmatprep.mubr.bf16.mxu0 0
          %1210 = vmatmul.mubr.bf16.gmra.mxu0 %v1172
          %v1211 = vpop.f32.mrf.mxu0
          %v1212 = vadd.f32 0.0, %v1211
          %v1213 = vpop.f32.mrf.mxu0
          %v1214 = vpop.f32.mrf.mxu0
          %v1215 = vpop.f32.mrf.mxu0
          %1216 = vdwg.mxu0
          %v1218 = vsel %vm1078, %v737, 0
          %v1221 = vsel %vm1078, %v907, 0
          %1223 = vmatprep.subr.bf16.mxu0 0
          %1224 = vmatpush1.bf16.xpose.msra.mxu0 0
          %1225 = vmatprep.subr.bf16.mxu0 0
          %1226 = vmatpush1.bf16.xpose.msra.mxu0 0
          %1227 = vmatprep.subr.bf16.mxu0 0
          %1228 = vmatpush1.bf16.xpose.msra.mxu0 0
          %1229 = vmatprep.subr.bf16.mxu0 0
          %1230 = vmatpush1.bf16.xpose.msra.mxu0 0
          %1231 = vmatprep.subr.bf16.mxu0 0
          %1232 = vmatpush1.bf16.xpose.msra.mxu0 0
          %1233 = vmatprep.subr.bf16.mxu0 0
          %1234 = vmatpush1.bf16.xpose.msra.mxu0 0
          %1235 = vmatprep.subr.bf16.mxu0 0
          %1236 = vmatpush1.bf16.xpose.msra.mxu0 0
          %1237 = vmatprep.subr.bf16.mxu0 0
          %1238 = vmatpush1.bf16.xpose.msra.mxu0 %v1221
          %1239 = vmatprep.subr.bf16.mxu0 0
          %1240 = vmatpush2.bf16.xpose.msra.mxu0 0
          %1241 = vmatprep.subr.bf16.mxu0 0
          %1242 = vmatpush2.bf16.xpose.msra.mxu0 0
          %1243 = vmatprep.subr.bf16.mxu0 0
          %1244 = vmatpush2.bf16.xpose.msra.mxu0 0
          %1245 = vmatprep.subr.bf16.mxu0 0
          %1246 = vmatpush2.bf16.xpose.msra.mxu0 0
          %1247 = vmatprep.subr.bf16.mxu0 0
          %1248 = vmatpush2.bf16.xpose.msra.mxu0 0
          %1249 = vmatprep.subr.bf16.mxu0 0
          %1250 = vmatpush2.bf16.xpose.msra.mxu0 0
          %1251 = vmatprep.subr.bf16.mxu0 0
          %1252 = vmatpush2.bf16.xpose.msra.mxu0 0
          %1253 = vmatprep.subr.bf16.mxu0 0
          %1254 = vmatpush2.bf16.xpose.msra.mxu0 0
          %1255 = vmatprep.mubr.bf16.mxu0 0
          %1256 = vmatmul.mubr.bf16.gmra.mxu0 %v1218
          %v1257 = vpop.f32.mrf.mxu0
          %v1258 = vadd.f32 0.0, %v1257
          %v1259 = vpop.f32.mrf.mxu0
          %v1260 = vpop.f32.mrf.mxu0
          %v1261 = vpop.f32.mrf.mxu0
          %1262 = vdwg.mxu0
          %v1263 = vsel %vm1078, %v1120, -inf
          %1264 = vmax.xlane.f32.xlu0 %v1263
          %v1265 = vpop.xlane.xlu0 %1264
          %v1266 = vsel %vm1078, %v1166, -inf
          %1267 = vmax.xlane.f32.xlu0 %v1266
          %v1268 = vpop.xlane.xlu0 %1267
          %v1269 = vsel %vm1078, %v1212, -inf
          %1270 = vmax.xlane.f32.xlu0 %v1269
          %v1271 = vpop.xlane.xlu0 %1270
          %v1272 = vsel %vm1078, %v1258, -inf
          %1273 = vmax.xlane.f32.xlu0 %v1272
          %v1274 = vpop.xlane.xlu0 %1273
          %v1275 = vsub.f32 %v1120, %v1265
          %v1276 = vsub.f32 %v1166, %v1268
          %v1277 = vsub.f32 %v1212, %v1271
          %v1278 = vsub.f32 %v1258, %v1274
          %v1279 = vmul.f32 %v1275, 1.442695
          %v1280 = vpow.pop %v1279
          %v1281 = vmul.f32 %v1276, 1.442695
          %v1282 = vpow.pop %v1281
          %v1283 = vmul.f32 %v1277, 1.442695
          %v1284 = vpow.pop %v1283
          %v1285 = vmul.f32 %v1278, 1.442695
          %v1286 = vpow.pop %v1285
          %v1287 = vsel %vm1078, %v1280, 0.0
          %1288 = vadd.xlane.f32.xlu0 %v1287
          %v1289 = vpop.xlane.xlu0 %1288
          %v1290 = vsel %vm1078, %v1282, 0.0
          %1291 = vadd.xlane.f32.xlu0 %v1290
          %v1292 = vpop.xlane.xlu0 %1291
          %v1293 = vsel %vm1078, %v1284, 0.0
          %1294 = vadd.xlane.f32.xlu0 %v1293
          %v1295 = vpop.xlane.xlu0 %1294
          %v1296 = vsel %vm1078, %v1286, 0.0
          %1297 = vadd.xlane.f32.xlu0 %v1296
          %v1298 = vpop.xlane.xlu0 %1297
          %v1299 = vrcp.pop %v1289
          %v1300 = vrcp.pop %v1292
          %v1301 = vrcp.pop %v1295
          %v1302 = vrcp.pop %v1298
          %v1303 = vmul.f32 %v1280, %v1299
          %v1304 = vmul.f32 %v1282, %v1300
          %v1305 = vmul.f32 %v1284, %v1301
          %v1306 = vmul.f32 %v1286, %v1302
          %v1307 = vpack.c.bf16 %v1303, %v1303
          %v1308 = vpack.c.bf16 %v1304, %v1304
          %v1309 = vpack.c.bf16 %v1305, %v1305
          %v1310 = vpack.c.bf16 %v1306, %v1306
          %v1312 = vsel %vm1078, %v1307, 0
          %vm1314 = vcmask 1043456
          %v1316 = vsel %vm1314, %v1068, 0
          %1318 = vmatprep.subr.bf16.mxu0 0
          %1319 = vmatpush1.bf16.msra.mxu0 0
          %1320 = vmatprep.subr.bf16.mxu0 0
          %1321 = vmatpush1.bf16.msra.mxu0 0
          %1322 = vmatprep.subr.bf16.mxu0 0
          %1323 = vmatpush1.bf16.msra.mxu0 0
          %1324 = vmatprep.subr.bf16.mxu0 0
          %1325 = vmatpush1.bf16.msra.mxu0 0
          %1326 = vmatprep.subr.bf16.mxu0 0
          %1327 = vmatpush1.bf16.msra.mxu0 0
          %1328 = vmatprep.subr.bf16.mxu0 0
          %1329 = vmatpush1.bf16.msra.mxu0 0
          %1330 = vmatprep.subr.bf16.mxu0 0
          %1331 = vmatpush1.bf16.msra.mxu0 0
          %1332 = vmatprep.subr.bf16.mxu0 0
          %1333 = vmatpush1.bf16.msra.mxu0 %v1316
          %1334 = vmatprep.subr.bf16.mxu0 0
          %1335 = vmatpush2.bf16.msra.mxu0 0
          %1336 = vmatprep.subr.bf16.mxu0 0
          %1337 = vmatpush2.bf16.msra.mxu0 0
          %1338 = vmatprep.subr.bf16.mxu0 0
          %1339 = vmatpush2.bf16.msra.mxu0 0
          %1340 = vmatprep.subr.bf16.mxu0 0
          %1341 = vmatpush2.bf16.msra.mxu0 0
          %1342 = vmatprep.subr.bf16.mxu0 0
          %1343 = vmatpush2.bf16.msra.mxu0 0
          %1344 = vmatprep.subr.bf16.mxu0 0
          %1345 = vmatpush2.bf16.msra.mxu0 0
          %1346 = vmatprep.subr.bf16.mxu0 0
          %1347 = vmatpush2.bf16.msra.mxu0 0
          %1348 = vmatprep.subr.bf16.mxu0 0
          %1349 = vmatpush2.bf16.msra.mxu0 0
          %1350 = vmatprep.mubr.bf16.mxu0 0
          %1351 = vmatmul.mubr.bf16.gmra.mxu0 %v1312
          %v1352 = vpop.f32.mrf.mxu0
          %v1353 = vadd.f32 0.0, %v1352
          %v1354 = vpop.f32.mrf.mxu0
          %v1355 = vpop.f32.mrf.mxu0
          %v1356 = vpop.f32.mrf.mxu0
          %1357 = vdwg.mxu0
          %v1359 = vsel %vm1078, %v1308, 0
          %v1362 = vsel %vm1314, %v1071, 0
          %1364 = vmatprep.subr.bf16.mxu0 0
          %1365 = vmatpush1.bf16.msra.mxu0 0
          %1366 = vmatprep.subr.bf16.mxu0 0
          %1367 = vmatpush1.bf16.msra.mxu0 0
          %1368 = vmatprep.subr.bf16.mxu0 0
          %1369 = vmatpush1.bf16.msra.mxu0 0
          %1370 = vmatprep.subr.bf16.mxu0 0
          %1371 = vmatpush1.bf16.msra.mxu0 0
          %1372 = vmatprep.subr.bf16.mxu0 0
          %1373 = vmatpush1.bf16.msra.mxu0 0
          %1374 = vmatprep.subr.bf16.mxu0 0
          %1375 = vmatpush1.bf16.msra.mxu0 0
          %1376 = vmatprep.subr.bf16.mxu0 0
          %1377 = vmatpush1.bf16.msra.mxu0 0
          %1378 = vmatprep.subr.bf16.mxu0 0
          %1379 = vmatpush1.bf16.msra.mxu0 %v1362
          %1380 = vmatprep.subr.bf16.mxu0 0
          %1381 = vmatpush2.bf16.msra.mxu0 0
          %1382 = vmatprep.subr.bf16.mxu0 0
          %1383 = vmatpush2.bf16.msra.mxu0 0
          %1384 = vmatprep.subr.bf16.mxu0 0
          %1385 = vmatpush2.bf16.msra.mxu0 0
          %1386 = vmatprep.subr.bf16.mxu0 0
          %1387 = vmatpush2.bf16.msra.mxu0 0
          %1388 = vmatprep.subr.bf16.mxu0 0
          %1389 = vmatpush2.bf16.msra.mxu0 0
          %1390 = vmatprep.subr.bf16.mxu0 0
          %1391 = vmatpush2.bf16.msra.mxu0 0
          %1392 = vmatprep.subr.bf16.mxu0 0
          %1393 = vmatpush2.bf16.msra.mxu0 0
          %1394 = vmatprep.subr.bf16.mxu0 0
          %1395 = vmatpush2.bf16.msra.mxu0 0
          %1396 = vmatprep.mubr.bf16.mxu0 0
          %1397 = vmatmul.mubr.bf16.gmra.mxu0 %v1359
          %v1398 = vpop.f32.mrf.mxu0
          %v1399 = vadd.f32 0.0, %v1398
          %v1400 = vpop.f32.mrf.mxu0
          %v1401 = vpop.f32.mrf.mxu0
          %v1402 = vpop.f32.mrf.mxu0
          %1403 = vdwg.mxu0
          %v1405 = vsel %vm1078, %v1309, 0
          %v1408 = vsel %vm1314, %v1074, 0
          %1410 = vmatprep.subr.bf16.mxu0 0
          %1411 = vmatpush1.bf16.msra.mxu0 0
          %1412 = vmatprep.subr.bf16.mxu0 0
          %1413 = vmatpush1.bf16.msra.mxu0 0
          %1414 = vmatprep.subr.bf16.mxu0 0
          %1415 = vmatpush1.bf16.msra.mxu0 0
          %1416 = vmatprep.subr.bf16.mxu0 0
          %1417 = vmatpush1.bf16.msra.mxu0 0
          %1418 = vmatprep.subr.bf16.mxu0 0
          %1419 = vmatpush1.bf16.msra.mxu0 0
          %1420 = vmatprep.subr.bf16.mxu0 0
          %1421 = vmatpush1.bf16.msra.mxu0 0
          %1422 = vmatprep.subr.bf16.mxu0 0
          %1423 = vmatpush1.bf16.msra.mxu0 0
          %1424 = vmatprep.subr.bf16.mxu0 0
          %1425 = vmatpush1.bf16.msra.mxu0 %v1408
          %1426 = vmatprep.subr.bf16.mxu0 0
          %1427 = vmatpush2.bf16.msra.mxu0 0
          %1428 = vmatprep.subr.bf16.mxu0 0
          %1429 = vmatpush2.bf16.msra.mxu0 0
          %1430 = vmatprep.subr.bf16.mxu0 0
          %1431 = vmatpush2.bf16.msra.mxu0 0
          %1432 = vmatprep.subr.bf16.mxu0 0
          %1433 = vmatpush2.bf16.msra.mxu0 0
          %1434 = vmatprep.subr.bf16.mxu0 0
          %1435 = vmatpush2.bf16.msra.mxu0 0
          %1436 = vmatprep.subr.bf16.mxu0 0
          %1437 = vmatpush2.bf16.msra.mxu0 0
          %1438 = vmatprep.subr.bf16.mxu0 0
          %1439 = vmatpush2.bf16.msra.mxu0 0
          %1440 = vmatprep.subr.bf16.mxu0 0
          %1441 = vmatpush2.bf16.msra.mxu0 0
          %1442 = vmatprep.mubr.bf16.mxu0 0
          %1443 = vmatmul.mubr.bf16.gmra.mxu0 %v1405
          %v1444 = vpop.f32.mrf.mxu0
          %v1445 = vadd.f32 0.0, %v1444
          %v1446 = vpop.f32.mrf.mxu0
          %v1447 = vpop.f32.mrf.mxu0
          %v1448 = vpop.f32.mrf.mxu0
          %1449 = vdwg.mxu0
          %v1451 = vsel %vm1078, %v1310, 0
          %v1454 = vsel %vm1314, %v1077, 0
          %1456 = vmatprep.subr.bf16.mxu0 0
          %1457 = vmatpush1.bf16.msra.mxu0 0
          %1458 = vmatprep.subr.bf16.mxu0 0
          %1459 = vmatpush1.bf16.msra.mxu0 0
          %1460 = vmatprep.subr.bf16.mxu0 0
          %1461 = vmatpush1.bf16.msra.mxu0 0
          %1462 = vmatprep.subr.bf16.mxu0 0
          %1463 = vmatpush1.bf16.msra.mxu0 0
          %1464 = vmatprep.subr.bf16.mxu0 0
          %1465 = vmatpush1.bf16.msra.mxu0 0
          %1466 = vmatprep.subr.bf16.mxu0 0
          %1467 = vmatpush1.bf16.msra.mxu0 0
          %1468 = vmatprep.subr.bf16.mxu0 0
          %1469 = vmatpush1.bf16.msra.mxu0 0
          %1470 = vmatprep.subr.bf16.mxu0 0
          %1471 = vmatpush1.bf16.msra.mxu0 %v1454
          %1472 = vmatprep.subr.bf16.mxu0 0
          %1473 = vmatpush2.bf16.msra.mxu0 0
          %1474 = vmatprep.subr.bf16.mxu0 0
          %1475 = vmatpush2.bf16.msra.mxu0 0
          %1476 = vmatprep.subr.bf16.mxu0 0
          %1477 = vmatpush2.bf16.msra.mxu0 0
          %1478 = vmatprep.subr.bf16.mxu0 0
          %1479 = vmatpush2.bf16.msra.mxu0 0
          %1480 = vmatprep.subr.bf16.mxu0 0
          %1481 = vmatpush2.bf16.msra.mxu0 0
          %1482 = vmatprep.subr.bf16.mxu0 0
          %1483 = vmatpush2.bf16.msra.mxu0 0
          %1484 = vmatprep.subr.bf16.mxu0 0
          %1485 = vmatpush2.bf16.msra.mxu0 0
          %1486 = vmatprep.subr.bf16.mxu0 0
          %1487 = vmatpush2.bf16.msra.mxu0 0
          %1488 = vmatprep.mubr.bf16.mxu0 0
          %1489 = vmatmul.mubr.bf16.gmra.mxu0 %v1451
          %v1490 = vpop.f32.mrf.mxu0
          %v1491 = vadd.f32 0.0, %v1490
          %v1492 = vpop.f32.mrf.mxu0
          %v1493 = vpop.f32.mrf.mxu0
          %v1494 = vpop.f32.mrf.mxu0
          %1495 = vdwg.mxu0
          %v1496 = vpack.c.bf16 %v1353, %v1353
          %v1498 = vunpack.c.l.s4 1983009808
          %v1499 = vunpack.c.0.s8 %v1498
          %v1500 = vlaneseq
          %v1501 = vshrl.u32 %v1500, 7
          %v1502 = vsub.s32 %v1499, %v1501
          %v1503 = vrot.slane %v1496, %v1502
          %v1504 = vpack.c.bf16 %v1445, %v1445
          %v1506 = vunpack.c.l.s4 1983009808
          %v1507 = vunpack.c.0.s8 %v1506
          %v1508 = vlaneseq
          %v1509 = vshrl.u32 %v1508, 7
          %v1510 = vsub.s32 %v1507, %v1509
          %v1511 = vrot.slane %v1504, %v1510
          %v1512 = vcombine.low %v1503, %v1511
          %v1513 = vcombine.high %v1503, %v1511
          %v1515 = vunpack.c.l.s4 1934713408
          %v1516 = vunpack.c.0.s8 %v1515
          %v1517 = vlaneseq
          %v1518 = vshrl.u32 %v1517, 7
          %v1519 = vsub.s32 %v1516, %v1518
          %v1520 = vrot.slane %v1512, %v1519
          %v1522 = vunpack.c.l.s4 1934713408
          %v1523 = vunpack.c.0.s8 %v1522
          %v1524 = vlaneseq
          %v1525 = vshrl.u32 %v1524, 7
          %v1526 = vsub.s32 %v1523, %v1525
          %v1527 = vrot.slane %v1513, %v1526
          %v1528 = vcombine.high %v1520, 0
          %v1529 = vcombine.high %v1527, 0
          %v1530 = vpack.c.bf16 %v1399, %v1399
          %v1532 = vunpack.c.l.s4 1983009808
          %v1533 = vunpack.c.0.s8 %v1532
          %v1534 = vlaneseq
          %v1535 = vshrl.u32 %v1534, 7
          %v1536 = vsub.s32 %v1533, %v1535
          %v1537 = vrot.slane %v1530, %v1536
          %v1538 = vpack.c.bf16 %v1491, %v1491
          %v1540 = vunpack.c.l.s4 1983009808
          %v1541 = vunpack.c.0.s8 %v1540
          %v1542 = vlaneseq
          %v1543 = vshrl.u32 %v1542, 7
          %v1544 = vsub.s32 %v1541, %v1543
          %v1545 = vrot.slane %v1538, %v1544
          %v1546 = vcombine.low %v1537, %v1545
          %v1547 = vcombine.high %v1537, %v1545
          %v1549 = vunpack.c.l.s4 1934713408
          %v1550 = vunpack.c.0.s8 %v1549
          %v1551 = vlaneseq
          %v1552 = vshrl.u32 %v1551, 7
          %v1553 = vsub.s32 %v1550, %v1552
          %v1554 = vrot.slane %v1546, %v1553
          %v1556 = vunpack.c.l.s4 1934713408
          %v1557 = vunpack.c.0.s8 %v1556
          %v1558 = vlaneseq
          %v1559 = vshrl.u32 %v1558, 7
          %v1560 = vsub.s32 %v1557, %v1559
          %v1561 = vrot.slane %v1547, %v1560
          %v1562 = vcombine.high %v1554, 0
          %v1563 = vcombine.high %v1561, 0
          %v1566 = vpack.i.b16 %v1554, %v1520
          %v1568 = vshrl.u32 %v1520, 16
          %v1569 = vshrl.u32 %v1554, 16
          %v1570 = vpack.i.b16 %v1569, %v1568
          %v1574 = vpack.i.b16 %v1562, %v1528
          %v1576 = vshrl.u32 %v1528, 16
          %v1577 = vshrl.u32 %v1562, 16
          %v1578 = vpack.i.b16 %v1577, %v1576
          %v1582 = vpack.i.b16 %v1561, %v1527
          %v1584 = vshrl.u32 %v1527, 16
          %v1585 = vshrl.u32 %v1561, 16
          %v1586 = vpack.i.b16 %v1585, %v1584
          %v1590 = vpack.i.b16 %v1563, %v1529
          %v1592 = vshrl.u32 %v1529, 16
          %v1593 = vshrl.u32 %v1563, 16
          %v1594 = vpack.i.b16 %v1593, %v1592
          %v1596 = vcombine.low %v1566, %v1582
          %v1598 = vunpack.c.l.s4 1983009808
          %v1599 = vunpack.c.0.s8 %v1598
          %v1600 = vlaneseq
          %v1601 = vshrl.u32 %v1600, 7
          %v1602 = vsub.s32 %v1599, %v1601
          %v1603 = vrot.slane %v1596, %v1602
          %v1604 = vcombine.low %v1574, %v1590
          %v1606 = vunpack.c.l.s4 1983009808
          %v1607 = vunpack.c.0.s8 %v1606
          %v1608 = vlaneseq
          %v1609 = vshrl.u32 %v1608, 7
          %v1610 = vsub.s32 %v1607, %v1609
          %v1611 = vrot.slane %v1604, %v1610
          %v1612 = vcombine.low %v1603, %v1611
          %v1614 = vunpack.c.l.s4 1934713408
          %v1615 = vunpack.c.0.s8 %v1614
          %v1616 = vlaneseq
          %v1617 = vshrl.u32 %v1616, 7
          %v1618 = vsub.s32 %v1615, %v1617
          %v1619 = vrot.slane %v1612, %v1618
          %v1620 = vcombine.high %v1619, 0
          %v1621 = vcombine.low %v1570, %v1586
          %v1623 = vunpack.c.l.s4 1983009808
          %v1624 = vunpack.c.0.s8 %v1623
          %v1625 = vlaneseq
          %v1626 = vshrl.u32 %v1625, 7
          %v1627 = vsub.s32 %v1624, %v1626
          %v1628 = vrot.slane %v1621, %v1627
          %v1629 = vcombine.low %v1578, %v1594
          %v1631 = vunpack.c.l.s4 1983009808
          %v1632 = vunpack.c.0.s8 %v1631
          %v1633 = vlaneseq
          %v1634 = vshrl.u32 %v1633, 7
          %v1635 = vsub.s32 %v1632, %v1634
          %v1636 = vrot.slane %v1629, %v1635
          %v1637 = vcombine.low %v1628, %v1636
          %v1639 = vunpack.c.l.s4 1934713408
          %v1640 = vunpack.c.0.s8 %v1639
          %v1641 = vlaneseq
          %v1642 = vshrl.u32 %v1641, 7
          %v1643 = vsub.s32 %v1640, %v1642
          %v1644 = vrot.slane %v1637, %v1643
          %v1645 = vcombine.high %v1644, 0
          %v1648 = vpack.i.b16 %v1644, %v1619
          %v1649 = vshrl.u32 %v1619, 16
          %v1650 = vshrl.u32 %v1644, 16
          %v1651 = vpack.i.b16 %v1650, %v1649
          %v1654 = vpack.i.b16 %v1645, %v1620
          %v1655 = vshrl.u32 %v1620, 16
          %v1656 = vshrl.u32 %v1645, 16
          %v1657 = vpack.i.b16 %v1656, %v1655
          %1658 = vrot.lane.b32.xlu0 %v1651, 8
          %v1659 = vpop.permute.xlu0 %1658
          %1660 = vrot.lane.b32.xlu0 %v1654, 16
          %v1661 = vpop.permute.xlu0 %1660
          %1662 = vrot.lane.b32.xlu0 %v1657, 24
          %v1663 = vpop.permute.xlu0 %1662
          %v1666 = vsel %vm1078, %v1648, %v1659
          %vm1667 = vcmask 130048
          %v1669 = vsel %vm1667, %v1666, %v1661
          %vm1670 = vcmask 195584
          %v1672 = vsel %vm1670, %v1669, %v1663
          %v1673 = vld [vmem:[%s4] sm:$0xf]
          %v1674 = vld [vmem:[%s4 + $0x4] sm:$0xf]
          %v1675 = vld [vmem:[%s4 + $0x8] sm:$0xf]
          %v1676 = vld [vmem:[%s4 + $0xc] sm:$0xf]
          %v1681 = vunpack.c.l.b16 %v1673
          %v1682 = vunpack.c.l.b16 %v1674
          %v1683 = vunpack.c.l.b16 %v1675
          %v1684 = vunpack.c.l.b16 %v1676
          %v1685 = vpack.c.b16 %v1682, %v1681
          %v1686 = vpack.c.b16 %v1684, %v1683
          %v1689 = vsel %vm480, %v1672, 0
          %1691 = vmatprep.subr.bf16.mxu0 0
          %1692 = vmatpush1.bf16.msra.mxu0 0
          %1693 = vmatprep.subr.bf16.mxu0 0
          %1694 = vmatpush1.bf16.msra.mxu0 0
          %1695 = vmatprep.subr.bf16.mxu0 0
          %1696 = vmatpush1.bf16.msra.mxu0 0
          %1697 = vmatprep.subr.bf16.mxu0 0
          %1698 = vmatpush1.bf16.msra.mxu0 0
          %1699 = vmatprep.subr.bf16.mxu0 0
          %1700 = vmatpush1.bf16.msra.mxu0 0
          %1701 = vmatprep.subr.bf16.mxu0 0
          %1702 = vmatpush1.bf16.msra.mxu0 0
          %1703 = vmatprep.subr.bf16.mxu0 0
          %1704 = vmatpush1.bf16.msra.mxu0 %v1686
          %1705 = vmatprep.subr.bf16.mxu0 0
          %1706 = vmatpush1.bf16.msra.mxu0 %v1685
          %1707 = vmatprep.subr.bf16.mxu0 0
          %1708 = vmatpush2.bf16.msra.mxu0 0
          %1709 = vmatprep.subr.bf16.mxu0 0
          %1710 = vmatpush2.bf16.msra.mxu0 0
          %1711 = vmatprep.subr.bf16.mxu0 0
          %1712 = vmatpush2.bf16.msra.mxu0 0
          %1713 = vmatprep.subr.bf16.mxu0 0
          %1714 = vmatpush2.bf16.msra.mxu0 0
          %1715 = vmatprep.subr.bf16.mxu0 0
          %1716 = vmatpush2.bf16.msra.mxu0 0
          %1717 = vmatprep.subr.bf16.mxu0 0
          %1718 = vmatpush2.bf16.msra.mxu0 0
          %1719 = vmatprep.subr.bf16.mxu0 0
          %1720 = vmatpush2.bf16.msra.mxu0 0
          %1721 = vmatprep.subr.bf16.mxu0 0
          %1722 = vmatpush2.bf16.msra.mxu0 0
          %1723 = vmatprep.mubr.bf16.mxu0 0
          %1724 = vmatmul.mubr.bf16.gmra.mxu0 %v1689
          %v1725 = vpop.f32.mrf.mxu0
          %v1726 = vadd.f32 0.0, %v1725
          %v1727 = vpop.f32.mrf.mxu0
          %v1728 = vpop.f32.mrf.mxu0
          %v1729 = vpop.f32.mrf.mxu0
          %1730 = vdwg.mxu0
          %v1731 = vadd.f32 %v477, %v1726
          %v1732 = vld [vmem:[#allocation8] sm:$0x1]
          %v1733 = vld [vmem:[#allocation9] sm:$0x1]
          %v1734 = vsel %vm480, %v1731, 0.0
          %1735 = vadd.xlane.f32.xlu0 %v1734
          %v1736 = vpop.xlane.xlu0 %1735
          %v1737 = vmul.f32 %v1736, %v484
          %v1738 = vsub.f32 %v1731, %v1737
          %v1739 = vmul.f32 %v1738, %v1738
          %v1740 = vsel %vm480, %v1739, 0.0
          %1741 = vadd.xlane.f32.xlu0 %v1740
          %v1742 = vpop.xlane.xlu0 %1741
          %v1743 = vmul.f32 %v1742, %v484
          %v1744 = vadd.f32 %v1743, 1e-05
          %v1745 = vrsqrt.pop %v1744
          %v1746 = vmul.f32 %v1738, %v1745
          %v1748 = vlaneseq
          %v1749 = vshrl.u32 %v1748, 7
          %v1750 = vsub.s32 0, %v1749
          %v1751 = vrot.slane %v1732, %v1750
          %v1753 = vmul.f32 %v1746, %v1751
          %v1755 = vlaneseq
          %v1756 = vshrl.u32 %v1755, 7
          %v1757 = vsub.s32 0, %v1756
          %v1758 = vrot.slane %v1733, %v1757
          %v1760 = vadd.f32 %v1753, %v1758
          %v1761 = vpack.c.bf16 %v1760, %v1760
          %vm1762 = vcmask 257024
          %1763 = vst.msk [vmem:[#allocation2] sm:$0xf] %vm1762, %v1761
          %v1764 = vld [vmem:[%s10] sm:$0x1]
          %v1766 = vlaneseq
          %v1767 = vshrl.u32 %v1766, 7
          %v1768 = vsub.s32 0, %v1767
          %v1769 = vrot.slane %v1764, %v1768
          %v1771 = vadd.f32 %v1731, %v1769
          %1772 = vst.msk [vmem:[%s467] sm:$0xff] %vm480, %v1771
        $region92: #{tpu_custom_call.1} parent=63 // pred_fallthru
          _
        %v1773 = vld [vmem:[#allocation2] sm:$0xf]
        %v1774 = vld [vmem:[#allocation11] sm:$0xf]
        %v1775 = vld [vmem:[#allocation11 + $0x4] sm:$0xf]
        %v1776 = vld [vmem:[#allocation11 + $0x8] sm:$0xf]
        %v1777 = vld [vmem:[#allocation11 + $0xc] sm:$0xf]
        %v1778 = vld [vmem:[#allocation12] sm:$0x1]
        %v1780 = vlaneseq
        %v1781 = vshrl.u32 %v1780, 7
        %v1782 = vsub.s32 0, %v1781
        %v1783 = vrot.slane %v1778, %v1782
        %v1789 = vunpack.c.l.b16 %v1774
        %v1790 = vunpack.c.l.b16 %v1775
        %v1791 = vunpack.c.l.b16 %v1776
        %v1792 = vunpack.c.l.b16 %v1777
        %v1793 = vpack.c.b16 %v1790, %v1789
        %v1794 = vpack.c.b16 %v1792, %v1791
        %vm1797 = vcmask 261120
        %v1799 = vsel %vm1797, %v1773, 0
        %1801 = vmatprep.subr.bf16.mxu0 0
        %1802 = vmatpush1.bf16.msra.mxu0 0
        %1803 = vmatprep.subr.bf16.mxu0 0
        %1804 = vmatpush1.bf16.msra.mxu0 0
        %1805 = vmatprep.subr.bf16.mxu0 0
        %1806 = vmatpush1.bf16.msra.mxu0 0
        %1807 = vmatprep.subr.bf16.mxu0 0
        %1808 = vmatpush1.bf16.msra.mxu0 0
        %1809 = vmatprep.subr.bf16.mxu0 0
        %1810 = vmatpush1.bf16.msra.mxu0 0
        %1811 = vmatprep.subr.bf16.mxu0 0
        %1812 = vmatpush1.bf16.msra.mxu0 0
        %1813 = vmatprep.subr.bf16.mxu0 0
        %1814 = vmatpush1.bf16.msra.mxu0 %v1794
        %1815 = vmatprep.subr.bf16.mxu0 0
        %1816 = vmatpush1.bf16.msra.mxu0 %v1793
        %1817 = vmatprep.subr.bf16.mxu0 0
        %1818 = vmatpush2.bf16.msra.mxu0 0
        %1819 = vmatprep.subr.bf16.mxu0 0
        %1820 = vmatpush2.bf16.msra.mxu0 0
        %1821 = vmatprep.subr.bf16.mxu0 0
        %1822 = vmatpush2.bf16.msra.mxu0 0
        %1823 = vmatprep.subr.bf16.mxu0 0
        %1824 = vmatpush2.bf16.msra.mxu0 0
        %1825 = vmatprep.subr.bf16.mxu0 0
        %1826 = vmatpush2.bf16.msra.mxu0 0
        %1827 = vmatprep.subr.bf16.mxu0 0
        %1828 = vmatpush2.bf16.msra.mxu0 0
        %1829 = vmatprep.subr.bf16.mxu0 0
        %1830 = vmatpush2.bf16.msra.mxu0 0
        %1831 = vmatprep.subr.bf16.mxu0 0
        %1832 = vmatpush2.bf16.msra.mxu0 0
        %1833 = vmatprep.mubr.bf16.mxu0 0
        %1834 = vmatmul.mubr.bf16.gmra.mxu0 %v1799
        %v1835 = vpop.f32.mrf.mxu0
        %v1836 = vadd.f32 %v1783, %v1835
        %v1837 = vpop.f32.mrf.mxu0
        %v1838 = vpop.f32.mrf.mxu0
        %v1839 = vpop.f32.mrf.mxu0
        %1840 = vdwg.mxu0
        %v1841 = vmul.f32 %v1836, 0.5
        %v1842 = vmul.f32 %v1836, 0.70710677
        %v1843 = verf.f32.pop %v1842
        %v1844 = vadd.f32 %v1843, 1.0
        %v1845 = vmul.f32 %v1841, %v1844
        %v1846 = vld [vmem:[%s467] sm:$0xff]
        %v1847 = vpack.c.bf16 %v1845, %v1845
        %v1848 = vld [vmem:[%s9] sm:$0xf]
        %v1849 = vld [vmem:[%s9 + $0x4] sm:$0xf]
        %v1850 = vld [vmem:[%s9 + $0x8] sm:$0xf]
        %v1851 = vld [vmem:[%s9 + $0xc] sm:$0xf]
        %v1852 = vld [vmem:[%s9 + $0x10] sm:$0xf]
        %v1853 = vld [vmem:[%s9 + $0x14] sm:$0xf]
        %v1854 = vld [vmem:[%s9 + $0x18] sm:$0xf]
        %v1855 = vld [vmem:[%s9 + $0x1c] sm:$0xf]
        %v1864 = vunpack.c.l.b16 %v1848
        %v1865 = vunpack.c.l.b16 %v1849
        %v1866 = vunpack.c.l.b16 %v1850
        %v1867 = vunpack.c.l.b16 %v1851
        %v1868 = vunpack.c.l.b16 %v1852
        %v1869 = vunpack.c.l.b16 %v1853
        %v1870 = vunpack.c.l.b16 %v1854
        %v1871 = vunpack.c.l.b16 %v1855
        %v1872 = vpack.c.b16 %v1865, %v1864
        %v1873 = vpack.c.b16 %v1867, %v1866
        %v1874 = vpack.c.b16 %v1869, %v1868
        %v1875 = vpack.c.b16 %v1871, %v1870
        %vm1880 = vcmask 523264
        %v1882 = vsel %vm1880, %v1847, 0
        %1884 = vmatprep.subr.bf16.mxu0 0
        %1885 = vmatpush1.bf16.msra.mxu0 0
        %1886 = vmatprep.subr.bf16.mxu0 0
        %1887 = vmatpush1.bf16.msra.mxu0 0
        %1888 = vmatprep.subr.bf16.mxu0 0
        %1889 = vmatpush1.bf16.msra.mxu0 0
        %1890 = vmatprep.subr.bf16.mxu0 0
        %1891 = vmatpush1.bf16.msra.mxu0 0
        %1892 = vmatprep.subr.bf16.mxu0 0
        %1893 = vmatpush1.bf16.msra.mxu0 %v1875
        %1894 = vmatprep.subr.bf16.mxu0 0
        %1895 = vmatpush1.bf16.msra.mxu0 %v1874
        %1896 = vmatprep.subr.bf16.mxu0 0
        %1897 = vmatpush1.bf16.msra.mxu0 %v1873
        %1898 = vmatprep.subr.bf16.mxu0 0
        %1899 = vmatpush1.bf16.msra.mxu0 %v1872
        %1900 = vmatprep.subr.bf16.mxu0 0
        %1901 = vmatpush2.bf16.msra.mxu0 0
        %1902 = vmatprep.subr.bf16.mxu0 0
        %1903 = vmatpush2.bf16.msra.mxu0 0
        %1904 = vmatprep.subr.bf16.mxu0 0
        %1905 = vmatpush2.bf16.msra.mxu0 0
        %1906 = vmatprep.subr.bf16.mxu0 0
        %1907 = vmatpush2.bf16.msra.mxu0 0
        %1908 = vmatprep.subr.bf16.mxu0 0
        %1909 = vmatpush2.bf16.msra.mxu0 0
        %1910 = vmatprep.subr.bf16.mxu0 0
        %1911 = vmatpush2.bf16.msra.mxu0 0
        %1912 = vmatprep.subr.bf16.mxu0 0
        %1913 = vmatpush2.bf16.msra.mxu0 0
        %1914 = vmatprep.subr.bf16.mxu0 0
        %1915 = vmatpush2.bf16.msra.mxu0 0
        %1916 = vmatprep.mubr.bf16.mxu0 0
        %1917 = vmatmul.mubr.bf16.gmra.mxu0 %v1882
        %v1918 = vpop.f32.mrf.mxu0
        %v1919 = vadd.f32 0.0, %v1918
        %v1920 = vpop.f32.mrf.mxu0
        %v1921 = vpop.f32.mrf.mxu0
        %v1922 = vpop.f32.mrf.mxu0
        %1923 = vdwg.mxu0
        %v1924 = vadd.f32 %v1846, %v1919
        %1925 = vst.msk [vmem:[%s467] sm:$0xff] %vm1797, %v1924
        %s1926 = sand.u32 %s285, 1
        %s1927 = scalar_lea.sflag [#allocation5], %s1926
        %s1928 = sand.u32 %s285, 1
        %s1929 = smul.addr %s1928, 8
        %s1930 = scalar_lea.vmem [#allocation14], %s1929
        // Predicated region
        $region93: #{tpu_custom_call.1} parent=63 // pred_check
          %p1931 = pneg %p295
        $region94: #{tpu_custom_call.1} parent=63 // pred_check_branch
          %1933 = sbr.rel (%p1931) target = $region96
        $region95: #{tpu_custom_call.1} parent=63 // pred_region
          %s1935 = ssub.s32 128, 128
          %1936 = vsyncadd %s1927, %s1935
          %s1937 = smul.addr %s33, 128
          %s1938 = scalar_lea.hbm %s11, %s1937
          %s1940 = sshll.u32 %s1930, 4
          %s1941 = int_to_ptr.vmem [resolvable:$true] %s1940
          %1943 = dma.vmem_to_hbm [thread:$0]  %s1941, 128, %s1938, %s1927
        $region96: #{tpu_custom_call.1} parent=63 // pred_fallthru
          _
      $region64: #{tpu_custom_call.1} parent=5 // pred_fallthru
        _
      %p1944 = scmp.le.s32.totalorder 2, %s24
      // Predicated region
      $region97: #{tpu_custom_call.1} parent=5 // pred_check
        %p1945 = pneg %p1944
      $region98: #{tpu_custom_call.1} parent=5 // pred_check_branch
        %1947 = sbr.rel (%p1945) target = $region100
      $region99: #{tpu_custom_call.1} parent=5 // pred_region
        %s1948 = ssub.s32 %s24, 2
        // Predicated region
        $region101: #{tpu_custom_call.1} parent=99 // pred_check
          %p1949 = pneg %p301
        $region102: #{tpu_custom_call.1} parent=99 // pred_check_branch
          %1951 = sbr.rel (%p1949) target = $region104
        $region103: #{tpu_custom_call.1} parent=99 // pred_region
          %s1952 = sand.u32 %s286, 1
          %s1953 = scalar_lea.sflag [#allocation5], %s1952
          %s1954 = sand.u32 %s286, 1
          %s1955 = smul.addr %s1954, 8
          %s1956 = scalar_lea.vmem [#allocation14], %s1955
          %1957 = dma.done %s1953, 128
        $region104: #{tpu_custom_call.1} parent=99 // pred_fallthru
          _
      $region100: #{tpu_custom_call.1} parent=5 // pred_fallthru
        _
    $region6: #{tpu_custom_call.1} parent=1 // loop_footer
      %s28 = sadd.s32 1, %s24
    $region7: #{tpu_custom_call.1} parent=1 // loop_footer_branch
      %23 = sbr.rel target = $region3
    $region8: #{tpu_custom_call.1} parent=1 // loop_exit
      _
    %1958 = vsyncpa [#allocation4], 1
    %s1959 = scalar_lea.sflag [#allocation4], 1
    %1960 = vsyncpa %s1959, 1
    %1961 = vsyncpa [#allocation7], 1
    %1962 = vsyncpa [#allocation10], 1
    %1963 = vsyncpa [#allocation13], 1
    %1964 = vsyncpa [#allocation5], 1
    %s1965 = scalar_lea.sflag [#allocation5], 1
    %1966 = vsyncpa %s1965, 1

</llo_original>
